<compile_context>
chip_gen: v7x
topology: tpu7x:2x2x1
jax: 0.10.0
libtpu: 0.0.40
codegen_flags: <defaults>
</compile_context>

<pallas_src>
import functools
import numpy as np
import jax
import jax.numpy as jnp
from jax.experimental import pallas as pl
from jax.experimental.pallas import tpu as pltpu


def _round_up(x, m):
    return ((x + m - 1) // m) * m


def _num_tensorcores():
    """Best-effort TensorCores-per-chip. Dual-core chips (v4/v5p megacore,
    v7x) benefit from a balanced 2-way 'parallel' row split; single-TC chips
    (v5e/v6e) run one block. Falls back to 1 (always correct)."""
    try:
        kind = jax.devices()[0].device_kind.lower()
    except Exception:
        return 1
    if ("v4" in kind) or ("v5p" in kind) or ("v7" in kind) or ("7x" in kind):
        return 2
    return 1


# --------------------------------------------------------------------------
# Kernels
# --------------------------------------------------------------------------
def _mlp3_kernel(x_ref, w1_ref, b1_ref, w2_ref, b2_ref, w3_ref, b3_ref, o_ref):
    """priors_downproj: relu(xW1+b1) -> relu(.W2+b2) -> .W3+b3.
    x arrives f32 and is cast to the weight dtype (bf16) in VMEM; all matmuls
    accumulate in f32.  Rows are independent, so the clipped partial last
    block is safe (garbage rows are never written back)."""
    x = x_ref[...].astype(w1_ref.dtype)
    h1 = jnp.dot(x, w1_ref[...], preferred_element_type=jnp.float32)
    h1 = jnp.maximum(h1 + b1_ref[...], 0.0).astype(w2_ref.dtype)
    h2 = jnp.dot(h1, w2_ref[...], preferred_element_type=jnp.float32)
    h2 = jnp.maximum(h2 + b2_ref[...], 0.0).astype(w3_ref.dtype)
    o_ref[...] = (jnp.dot(h2, w3_ref[...], preferred_element_type=jnp.float32)
                  + b3_ref[...])


def _sim_path_kernel(x_ref, w1_ref, b1_ref, w2_ref, b2_ref, gf_ref, txt_ref,
                     ho_ref, lg_ref):
    """Fused compute_sim_scores path (single launch, two outputs):
      ho_tokens = query_proj(x) = relu(xW1+b1)W2 + b2
      logits    = normalize(global_feat)[:, :-1] @ txt   (scale pre-folded)
    """
    # --- query_proj (2-layer MLP) ---
    x = x_ref[...].astype(w1_ref.dtype)
    h1 = jnp.dot(x, w1_ref[...], preferred_element_type=jnp.float32)
    h1 = jnp.maximum(h1 + b1_ref[...], 0.0).astype(w2_ref.dtype)
    ho_ref[...] = (jnp.dot(h1, w2_ref[...], preferred_element_type=jnp.float32)
                   + b2_ref[...])
    # --- cosine-similarity logits ---
    gf = gf_ref[...]                                        # (Ng, D+1) f32
    gf = gf * jax.lax.rsqrt(jnp.sum(gf * gf, axis=-1, keepdims=True))
    d = txt_ref.shape[0]
    gf = gf[:, :d].astype(txt_ref.dtype)                    # drop last col, bf16
    lg_ref[...] = jnp.dot(gf, txt_ref[...],
                          preferred_element_type=jnp.float32)


# --------------------------------------------------------------------------
# One-time parameter preparation (host precompute, once per model)
# --------------------------------------------------------------------------
def prep_mlp_params(layers, compute_dtype=jnp.bfloat16, n_pad=128):
    """layers: list of (w, b), w stored (in, out) so kernels do x @ W + b.
    Pads only the LAST layer's output dim to a multiple of 128 (lane-dense
    stores); weights cast to the MXU compute dtype, biases stay f32."""
    ws = [jnp.asarray(w, jnp.float32) for w, _ in layers]
    bs = [jnp.asarray(b, jnp.float32).reshape(1, -1) for _, b in layers]
    dout = ws[-1].shape[1]
    dout_p = _round_up(dout, n_pad)
    if dout_p != dout:
        ws[-1] = jnp.pad(ws[-1], ((0, 0), (0, dout_p - dout)))
        bs[-1] = jnp.pad(bs[-1], ((0, 0), (0, dout_p - dout)))
    return tuple(w.astype(compute_dtype) for w in ws), tuple(bs)


def prep_text(text_features, logit_scale, c_pad=128, compute_dtype=jnp.bfloat16):
    """Transpose + lane-pad the (already L2-normalized) text features, fold
    exp(logit_scale_text) into them (exact), cast to bf16.  Re-run whenever
    logit_scale_text or the class set changes (it is a learnable parameter)."""
    txt = jnp.asarray(text_features, jnp.float32)
    c = txt.shape[0]
    c_p = _round_up(c, c_pad)
    if c_p != c:
        txt = jnp.pad(txt, ((0, c_p - c), (0, 0)))
    scale = jnp.exp(jnp.asarray(logit_scale, jnp.float32).reshape(()))
    return (txt.T * scale).astype(compute_dtype)            # (D, C_pad)


# --------------------------------------------------------------------------
# Wrappers
# --------------------------------------------------------------------------
def mlp3(x, ws, bs, out_dim, max_tm=1024):
    """x: (M, Din) f32 -> (M, out_dim) f32.  Chip-aware row tiling:
    single block on 1-TC chips, balanced split on 2-TC chips."""
    w1, w2, w3 = ws
    b1, b2, b3 = bs
    m, din = x.shape
    h1, h2, dout_p = w1.shape[1], w2.shape[1], w3.shape[1]

    n_tc = _num_tensorcores()
    if n_tc > 1 and m > 8 * n_tc:
        tm = _round_up(pl.cdiv(m, n_tc), 8)   # e.g. 392 -> 200/192 split
    else:
        tm = _round_up(m, 8)                  # single block (v5e/v6e)
    tm = min(tm, max_tm)
    grid = (pl.cdiv(m, tm),)

    out = pl.pallas_call(
        _mlp3_kernel,
        out_shape=jax.ShapeDtypeStruct((m, dout_p), jnp.float32),
        grid=grid,
        in_specs=[
            pl.BlockSpec((tm, din), lambda i: (i, 0)),      # x tile (f32)
            pl.BlockSpec((din, h1), lambda i: (0, 0)),      # weights resident
            pl.BlockSpec((1, h1), lambda i: (0, 0)),
            pl.BlockSpec((h1, h2), lambda i: (0, 0)),
            pl.BlockSpec((1, h2), lambda i: (0, 0)),
            pl.BlockSpec((h2, dout_p), lambda i: (0, 0)),
            pl.BlockSpec((1, dout_p), lambda i: (0, 0)),
        ],
        out_specs=pl.BlockSpec((tm, dout_p), lambda i: (i, 0)),
        compiler_params=pltpu.CompilerParams(
            dimension_semantics=("parallel",)),
    )(x, w1, b1, w2, b2, w3, b3)
    if dout_p != out_dim:
        out = out[:, :out_dim]   # fuses with downstream reshape under jit
    return out


def sim_path(ho_in, q_ws, q_bs, global_feat, txt_t, num_classes):
    """Fused query_proj + cosine-sim logits (one pallas_call, two outputs).
    ho_in: (M, 512) f32; global_feat: (Ng, D+1) f32; txt_t: (D, C_pad) bf16
    with exp(logit_scale) pre-folded."""
    w1, w2 = q_ws
    b1, b2 = q_bs
    m = ho_in.shape[0]
    ng = global_feat.shape[0]
    dout = w2.shape[1]
    c_p = txt_t.shape[1]
    vmem = pl.BlockSpec(memory_space=pltpu.MemorySpace.VMEM)

    ho_tokens, logits_p = pl.pallas_call(
        _sim_path_kernel,
        out_shape=(jax.ShapeDtypeStruct((m, dout), jnp.float32),
                   jax.ShapeDtypeStruct((ng, c_p), jnp.float32)),
        in_specs=[vmem] * 7,
        out_specs=(vmem, vmem),
    )(ho_in, w1, b1, w2, b2, global_feat, txt_t)

    if c_p != num_classes:
        logits_p = logits_p[:, :num_classes]
    return ho_tokens, logits_p


# Composite paths under a single jit each (slice/reshape fuse with the kernel
# writeback; no host round-trips between ops).
@functools.partial(jax.jit, static_argnames=("out_dim",))
def priors_downproj_path(priors_dim, p_ws, p_bs, out_dim):
    b, hh, ww, din = priors_dim.shape
    out = mlp3(priors_dim.reshape(b * hh * ww, din), p_ws, p_bs, out_dim)
    return out.reshape(b, hh, ww, out_dim)


@functools.partial(jax.jit, static_argnames=("num_classes",))
def sim_scores_path(ho_in, q_ws, q_bs, global_feat, txt_t, num_classes):
    # TODO(synk): in the full model the external CLIP image encoder sits
    # between query_proj (ho_tokens) and the logits (it produces global_feat);
    # here global_feat is an input, so the two ops fuse into one launch.
    return sim_path(ho_in, q_ws, q_bs, global_feat, txt_t, num_classes)


# --------------------------------------------------------------------------
# Deterministic parameter init (mimics torch.nn.Linear default init)
# --------------------------------------------------------------------------
def linear_init(key, fan_in, fan_out):
    k1, k2 = jax.random.split(key)
    bound = 1.0 / np.sqrt(fan_in)
    # stored as (in, out) so the kernels do x @ W + b  (== x @ W_torch.T + b)
    w = jax.random.uniform(k1, (fan_in, fan_out), jnp.float32, -bound, bound)
    b = jax.random.uniform(k2, (1, fan_out), jnp.float32, -bound, bound)
    return w, b


def _ref_mlp(x, layers):
    h = x
    for i, (w, b) in enumerate(layers):
        h = h @ w + b
        if i < len(layers) - 1:
            h = jnp.maximum(h, 0.0)
    return h


# TODO(synk): DETR backbone/transformer, CLIP image/text encoders, batched
# NMS, box-IoU ground-truth association and the ragged scatter / per-box
# rasterization in compute_prior_scores & get_prior are external or
# data-dependent-ragged and are not translated here.

if __name__ == "__main__":
    key = jax.random.PRNGKey(0)
    keys = jax.random.split(key, 12)

    B = 2
    visual_output_dim = 512
    priors_initial_dim = visual_output_dim + 5      # 517
    adapt_dim = 64
    num_text_classes = 24

    # --- LAIN's own parameters ---
    # priors_downproj = MLP(517, 128, adapt_dim, 3)   (output lane-padded 64->128)
    p_layers = [linear_init(keys[0], priors_initial_dim, 128),
                linear_init(keys[1], 128, 128),
                linear_init(keys[2], 128, adapt_dim)]
    p_ws, p_bs = prep_mlp_params(p_layers)
    # query_proj = MLP(512, 128, 768, 2)              (already lane-aligned)
    q_layers = [linear_init(keys[3], 512, 128),
                linear_init(keys[4], 128, 768)]
    q_ws, q_bs = prep_mlp_params(q_layers)
    # logit_scale_text = log(1/0.07); text features precomputed once per class set
    logit_scale_text = jnp.array([np.log(1.0 / 0.07)], dtype=jnp.float32)
    text_features = jax.random.normal(keys[8], (num_text_classes, visual_output_dim),
                                      jnp.float32)
    text_features = text_features / jnp.linalg.norm(text_features, axis=-1,
                                                    keepdims=True)
    txt_t = prep_text(text_features, logit_scale_text)

    # --- get_prior hot path: priors_downproj over the (B,14,14,517) grid ---
    priors_dim = jax.random.normal(keys[5], (B, 14, 14, priors_initial_dim),
                                   jnp.float32)
    priors = priors_downproj_path(priors_dim, p_ws, p_bs, out_dim=adapt_dim)

    # --- compute_sim_scores hot path: ho tokens + cosine-sim logits ---
    n, n_h = 5, 2                                    # 5 detections, 2 humans
    feats = jax.random.normal(keys[6], (n, 256), jnp.float32)
    xg, yg = jnp.meshgrid(jnp.arange(n), jnp.arange(n), indexing="ij")
    xk, yk = jnp.nonzero(jnp.logical_and(xg != yg, xg < n_h))   # 8 pairs
    ho_in = jnp.concatenate([feats[xk], feats[yk]], axis=-1)    # (8, 512)

    num_tokens = ho_in.shape[0] + 1                              # 9
    global_feat = jax.random.normal(keys[7], (num_tokens, visual_output_dim + 1),
                                    jnp.float32)

    ho_tokens, logits = sim_scores_path(ho_in, q_ws, q_bs, global_feat, txt_t,
                                        num_classes=num_text_classes)

    jax.block_until_ready((priors, ho_tokens, logits))

    # --- sanity checks against an f32 pure-JAX reference (loose tolerance:
    #     bf16 operands, f32 accumulation) ---
    assert priors.shape == (B, 14, 14, adapt_dim)
    assert ho_tokens.shape == (ho_in.shape[0], 768)
    assert logits.shape == (num_tokens, num_text_classes)

    ref_priors = _ref_mlp(priors_dim.reshape(-1, priors_initial_dim),
                          p_layers).reshape(B, 14, 14, adapt_dim)
    ref_ho = _ref_mlp(ho_in, q_layers)
    gf = global_feat / jnp.linalg.norm(global_feat, axis=-1, keepdims=True)
    ref_logits = (gf[:, :-1] @ text_features.T) * jnp.exp(logit_scale_text[0])

    np.testing.assert_allclose(np.asarray(priors), np.asarray(ref_priors),
                               rtol=1e-1, atol=1e-1)
    np.testing.assert_allclose(np.asarray(ho_tokens), np.asarray(ref_ho),
                               rtol=1e-1, atol=1e-1)
    np.testing.assert_allclose(np.asarray(logits), np.asarray(ref_logits),
                               rtol=1e-1, atol=1e-1)

    print("KERNEL_OK")
</pallas_src>

<mosaic_0001>
module attributes {stable_mosaic.version = 11 : i64} {
  func.func @_mlp3_kernel(%arg0: i32, %arg1: memref<392x517xf32, #tpu.memory_space<vmem>>, %arg2: memref<517x128xbf16, #tpu.memory_space<vmem>>, %arg3: memref<1x128xf32, #tpu.memory_space<vmem>>, %arg4: memref<128x128xbf16, #tpu.memory_space<vmem>>, %arg5: memref<1x128xf32, #tpu.memory_space<vmem>>, %arg6: memref<128x128xbf16, #tpu.memory_space<vmem>>, %arg7: memref<1x128xf32, #tpu.memory_space<vmem>>, %arg8: memref<392x128xf32, #tpu.memory_space<vmem>>) attributes {dimension_semantics = [#tpu.dimension_semantics<parallel>], iteration_bounds = array<i64: 1>, scalar_prefetch = 0 : i64, scratch_operands = 0 : i64, tpu.core_type = #tpu.core_type<tc>, window_params = [{transform_indices = @transform_0, window_bounds = array<i64: 392, 517>}, {pipeline_mode = #tpu.pipeline_mode<synchronous>, transform_indices = @transform_1, window_bounds = array<i64: 517, 128>}, {pipeline_mode = #tpu.pipeline_mode<synchronous>, transform_indices = @transform_2, window_bounds = array<i64: 1, 128>}, {pipeline_mode = #tpu.pipeline_mode<synchronous>, transform_indices = @transform_3, window_bounds = array<i64: 128, 128>}, {pipeline_mode = #tpu.pipeline_mode<synchronous>, transform_indices = @transform_4, window_bounds = array<i64: 1, 128>}, {pipeline_mode = #tpu.pipeline_mode<synchronous>, transform_indices = @transform_5, window_bounds = array<i64: 128, 128>}, {pipeline_mode = #tpu.pipeline_mode<synchronous>, transform_indices = @transform_6, window_bounds = array<i64: 1, 128>}, {transform_indices = @transform_7, window_bounds = array<i64: 392, 128>}]} {
    %c0 = arith.constant 0 : index
    %c0_0 = arith.constant 0 : index
    %0 = vector.load %arg1[%c0, %c0_0] : memref<392x517xf32, #tpu.memory_space<vmem>>, vector<392x517xf32>
    %1 = arith.truncf %0 : vector<392x517xf32> to vector<392x517xbf16>
    %c0_1 = arith.constant 0 : index
    %c0_2 = arith.constant 0 : index
    %2 = vector.load %arg2[%c0_1, %c0_2] : memref<517x128xbf16, #tpu.memory_space<vmem>>, vector<517x128xbf16>
    %cst = arith.constant dense<0.000000e+00> : vector<392x128xf32>
    %3 = tpu.matmul %1, %2, %cst {dimension_numbers = #tpu.dot_dimension_numbers<[1], [0], [0], [1], [0, 0, 1, 1], [], []>} : vector<392x517xbf16>, vector<517x128xbf16>, vector<392x128xf32> -> vector<392x128xf32>
    %c0_3 = arith.constant 0 : index
    %c0_4 = arith.constant 0 : index
    %4 = vector.load %arg3[%c0_3, %c0_4] : memref<1x128xf32, #tpu.memory_space<vmem>>, vector<1x128xf32>
    %5 = vector.broadcast %4 : vector<1x128xf32> to vector<392x128xf32>
    %6 = arith.addf %3, %5 : vector<392x128xf32>
    %cst_5 = arith.constant 0.000000e+00 : f32
    %7 = vector.broadcast %cst_5 : f32 to vector<392x128xf32>
    %8 = arith.maximumf %6, %7 : vector<392x128xf32>
    %9 = arith.truncf %8 : vector<392x128xf32> to vector<392x128xbf16>
    %c0_6 = arith.constant 0 : index
    %c0_7 = arith.constant 0 : index
    %10 = vector.load %arg4[%c0_6, %c0_7] : memref<128x128xbf16, #tpu.memory_space<vmem>>, vector<128x128xbf16>
    %cst_8 = arith.constant dense<0.000000e+00> : vector<392x128xf32>
    %11 = tpu.matmul %9, %10, %cst_8 {dimension_numbers = #tpu.dot_dimension_numbers<[1], [0], [0], [1], [0, 0, 1, 1], [], []>} : vector<392x128xbf16>, vector<128x128xbf16>, vector<392x128xf32> -> vector<392x128xf32>
    %c0_9 = arith.constant 0 : index
    %c0_10 = arith.constant 0 : index
    %12 = vector.load %arg5[%c0_9, %c0_10] : memref<1x128xf32, #tpu.memory_space<vmem>>, vector<1x128xf32>
    %13 = vector.broadcast %12 : vector<1x128xf32> to vector<392x128xf32>
    %14 = arith.addf %11, %13 : vector<392x128xf32>
    %cst_11 = arith.constant 0.000000e+00 : f32
    %15 = vector.broadcast %cst_11 : f32 to vector<392x128xf32>
    %16 = arith.maximumf %14, %15 : vector<392x128xf32>
    %17 = arith.truncf %16 : vector<392x128xf32> to vector<392x128xbf16>
    %c0_12 = arith.constant 0 : index
    %c0_13 = arith.constant 0 : index
    %18 = vector.load %arg6[%c0_12, %c0_13] : memref<128x128xbf16, #tpu.memory_space<vmem>>, vector<128x128xbf16>
    %cst_14 = arith.constant dense<0.000000e+00> : vector<392x128xf32>
    %19 = tpu.matmul %17, %18, %cst_14 {dimension_numbers = #tpu.dot_dimension_numbers<[1], [0], [0], [1], [0, 0, 1, 1], [], []>} : vector<392x128xbf16>, vector<128x128xbf16>, vector<392x128xf32> -> vector<392x128xf32>
    %c0_15 = arith.constant 0 : index
    %c0_16 = arith.constant 0 : index
    %20 = vector.load %arg7[%c0_15, %c0_16] : memref<1x128xf32, #tpu.memory_space<vmem>>, vector<1x128xf32>
    %21 = vector.broadcast %20 : vector<1x128xf32> to vector<392x128xf32>
    %22 = arith.addf %19, %21 : vector<392x128xf32>
    %c0_17 = arith.constant 0 : index
    %c0_18 = arith.constant 0 : index
    %23 = vector.load %arg8[%c0_17, %c0_18] : memref<392x128xf32, #tpu.memory_space<vmem>>, vector<392x128xf32>
    tpu.vector_store %arg8[%c0_17, %c0_18], %22 {strides = array<i32>} : memref<392x128xf32, #tpu.memory_space<vmem>>, vector<392x128xf32>,
    return
  }
  func.func @transform_0(%arg0: i32) -> (i32, i32) {
    %c0_i32 = arith.constant 0 : i32
    %c0_i32_0 = arith.constant 0 : i32
    return %arg0, %c0_i32 : i32, i32
  }
  func.func @transform_1(%arg0: i32) -> (i32, i32) {
    %c0_i32 = arith.constant 0 : i32
    %c0_i32_0 = arith.constant 0 : i32
    %c0_i32_1 = arith.constant 0 : i32
    return %c0_i32, %c0_i32_0 : i32, i32
  }
  func.func @transform_2(%arg0: i32) -> (i32, i32) {
    %c0_i32 = arith.constant 0 : i32
    %c0_i32_0 = arith.constant 0 : i32
    %c0_i32_1 = arith.constant 0 : i32
    return %c0_i32, %c0_i32_0 : i32, i32
  }
  func.func @transform_3(%arg0: i32) -> (i32, i32) {
    %c0_i32 = arith.constant 0 : i32
    %c0_i32_0 = arith.constant 0 : i32
    %c0_i32_1 = arith.constant 0 : i32
    return %c0_i32, %c0_i32_0 : i32, i32
  }
  func.func @transform_4(%arg0: i32) -> (i32, i32) {
    %c0_i32 = arith.constant 0 : i32
    %c0_i32_0 = arith.constant 0 : i32
    %c0_i32_1 = arith.constant 0 : i32
    return %c0_i32, %c0_i32_0 : i32, i32
  }
  func.func @transform_5(%arg0: i32) -> (i32, i32) {
    %c0_i32 = arith.constant 0 : i32
    %c0_i32_0 = arith.constant 0 : i32
    %c0_i32_1 = arith.constant 0 : i32
    return %c0_i32, %c0_i32_0 : i32, i32
  }
  func.func @transform_6(%arg0: i32) -> (i32, i32) {
    %c0_i32 = arith.constant 0 : i32
    %c0_i32_0 = arith.constant 0 : i32
    %c0_i32_1 = arith.constant 0 : i32
    return %c0_i32, %c0_i32_0 : i32, i32
  }
  func.func @transform_7(%arg0: i32) -> (i32, i32) {
    %c0_i32 = arith.constant 0 : i32
    %c0_i32_0 = arith.constant 0 : i32
    return %arg0, %c0_i32 : i32, i32
  }
}

</mosaic_0001>

<llo_original>
// kernel: priors_downproj_path.1
$region0: #{priors_downproj_path.1}
  #allocation0 [shape = 'u32[]', space=smem, size = 0x4, offset = 0x4, fixed_abs, tag = 'smem constant byte address 0x4 - core index']
  #allocation1 [shape = 'u32[144,128]{1,0:T(1,128)}', space=vmem, size = 0x12000, scoped, tag = 'internal scratch']
  %s0 = inlined_call_operand.vmem [shape: f32[392,517], index: 0, kind: input, shape index: {}]
  %s1 = inlined_call_operand.vmem [shape: bf16[517,128], index: 1, kind: input, shape index: {}]
  %s2 = inlined_call_operand.vmem [shape: f32[1,128], index: 2, kind: input, shape index: {}]
  %s3 = inlined_call_operand.vmem [shape: bf16[128,128], index: 3, kind: input, shape index: {}]
  %s4 = inlined_call_operand.vmem [shape: f32[1,128], index: 4, kind: input, shape index: {}]
  %s5 = inlined_call_operand.vmem [shape: bf16[128,128], index: 5, kind: input, shape index: {}]
  %s6 = inlined_call_operand.vmem [shape: f32[1,128], index: 6, kind: input, shape index: {}]
  %s7 = inlined_call_operand.vmem [shape: f32[392,128], index: 7, kind: output, shape index: {}]
  %s8 = sld [smem:[#allocation0]]
  $region38: #{priors_downproj_path.1} parent=0
    _
  %s10 = ssub.s32 1, %s8
  %s11 = scalar_select 0, %s10, %s8
  // Predicated region
  $region2: #{priors_downproj_path.1} parent=0 // pred_check
    _
  $region3: #{priors_downproj_path.1} parent=0 // pred_check_branch
    %13 = sbr.rel (0) target = $region5
  $region4: #{priors_downproj_path.1} parent=0 // pred_region
    _
  $region5: #{priors_downproj_path.1} parent=0 // pred_fallthru
    _
  // Predicated region
  $region6: #{priors_downproj_path.1} parent=0 // pred_check
    _
  $region7: #{priors_downproj_path.1} parent=0 // pred_check_branch
    %15 = sbr.rel (0) target = $region9
  $region8: #{priors_downproj_path.1} parent=0 // pred_region
    _
  $region9: #{priors_downproj_path.1} parent=0 // pred_fallthru
    _
  // Predicated region
  $region10: #{priors_downproj_path.1} parent=0 // pred_check
    _
  $region11: #{priors_downproj_path.1} parent=0 // pred_check_branch
    %17 = sbr.rel (0) target = $region13
  $region12: #{priors_downproj_path.1} parent=0 // pred_region
    _
  $region13: #{priors_downproj_path.1} parent=0 // pred_fallthru
    _
  // Predicated region
  $region14: #{priors_downproj_path.1} parent=0 // pred_check
    _
  $region15: #{priors_downproj_path.1} parent=0 // pred_check_branch
    %19 = sbr.rel (0) target = $region17
  $region16: #{priors_downproj_path.1} parent=0 // pred_region
    _
  $region17: #{priors_downproj_path.1} parent=0 // pred_fallthru
    _
  // Predicated region
  $region18: #{priors_downproj_path.1} parent=0 // pred_check
    _
  $region19: #{priors_downproj_path.1} parent=0 // pred_check_branch
    %21 = sbr.rel (0) target = $region21
  $region20: #{priors_downproj_path.1} parent=0 // pred_region
    _
  $region21: #{priors_downproj_path.1} parent=0 // pred_fallthru
    _
  // Predicated region
  $region22: #{priors_downproj_path.1} parent=0 // pred_check
    _
  $region23: #{priors_downproj_path.1} parent=0 // pred_check_branch
    %23 = sbr.rel (0) target = $region25
  $region24: #{priors_downproj_path.1} parent=0 // pred_region
    _
  $region25: #{priors_downproj_path.1} parent=0 // pred_fallthru
    _
  // Predicated region
  $region26: #{priors_downproj_path.1} parent=0 // pred_check
    _
  $region27: #{priors_downproj_path.1} parent=0 // pred_check_branch
    %25 = sbr.rel (0) target = $region29
  $region28: #{priors_downproj_path.1} parent=0 // pred_region
    _
  $region29: #{priors_downproj_path.1} parent=0 // pred_fallthru
    _
  %v27 = vld [vmem:[%s0] sm:$0xff]
  %v28 = vld [vmem:[%s0 + $0x8] sm:$0xff]
  %v29 = vld [vmem:[%s0 + $0x10] sm:$0xff]
  %v30 = vld [vmem:[%s0 + $0x18] sm:$0xff]
  %v31 = vld [vmem:[%s0 + $0x20] sm:$0xff]
  %v32 = vld [vmem:[%s0 + $0x28] sm:$0xff]
  %v33 = vld [vmem:[%s0 + $0x30] sm:$0xff]
  %v34 = vld [vmem:[%s0 + $0x38] sm:$0xff]
  %v35 = vld [vmem:[%s0 + $0x40] sm:$0xff]
  %v36 = vld [vmem:[%s0 + $0x48] sm:$0xff]
  %v37 = vld [vmem:[%s0 + $0x50] sm:$0xff]
  %v38 = vld [vmem:[%s0 + $0x58] sm:$0xff]
  %v39 = vld [vmem:[%s0 + $0x60] sm:$0xff]
  %v40 = vld [vmem:[%s0 + $0x68] sm:$0xff]
  %v41 = vld [vmem:[%s0 + $0x70] sm:$0xff]
  %v42 = vld [vmem:[%s0 + $0x78] sm:$0xff]
  %v43 = vld [vmem:[%s0 + $0x80] sm:$0xff]
  %v44 = vld [vmem:[%s0 + $0x88] sm:$0xff]
  %v45 = vld [vmem:[%s0 + $0x90] sm:$0xff]
  %v46 = vld [vmem:[%s0 + $0x98] sm:$0xff]
  %v47 = vld [vmem:[%s0 + $0xa0] sm:$0xff]
  %v48 = vld [vmem:[%s0 + $0xa8] sm:$0xff]
  %v49 = vld [vmem:[%s0 + $0xb0] sm:$0xff]
  %v50 = vld [vmem:[%s0 + $0xb8] sm:$0xff]
  %v51 = vld [vmem:[%s0 + $0xc0] sm:$0xff]
  %v52 = vld [vmem:[%s0 + $0xc8] sm:$0xff]
  %v53 = vld [vmem:[%s0 + $0xd0] sm:$0xff]
  %v54 = vld [vmem:[%s0 + $0xd8] sm:$0xff]
  %v55 = vld [vmem:[%s0 + $0xe0] sm:$0xff]
  %v56 = vld [vmem:[%s0 + $0xe8] sm:$0xff]
  %v57 = vld [vmem:[%s0 + $0xf0] sm:$0xff]
  %v58 = vld [vmem:[%s0 + $0xf8] sm:$0xff]
  %v59 = vld [vmem:[%s0 + $0x100] sm:$0xff]
  %v60 = vld [vmem:[%s0 + $0x108] sm:$0xff]
  %v61 = vld [vmem:[%s0 + $0x110] sm:$0xff]
  %v62 = vld [vmem:[%s0 + $0x118] sm:$0xff]
  %v63 = vld [vmem:[%s0 + $0x120] sm:$0xff]
  %v64 = vld [vmem:[%s0 + $0x128] sm:$0xff]
  %v65 = vld [vmem:[%s0 + $0x130] sm:$0xff]
  %v66 = vld [vmem:[%s0 + $0x138] sm:$0xff]
  %v67 = vld [vmem:[%s0 + $0x140] sm:$0xff]
  %v68 = vld [vmem:[%s0 + $0x148] sm:$0xff]
  %v69 = vld [vmem:[%s0 + $0x150] sm:$0xff]
  %v70 = vld [vmem:[%s0 + $0x158] sm:$0xff]
  %v71 = vld [vmem:[%s0 + $0x160] sm:$0xff]
  %v72 = vld [vmem:[%s0 + $0x168] sm:$0xff]
  %v73 = vld [vmem:[%s0 + $0x170] sm:$0xff]
  %v74 = vld [vmem:[%s0 + $0x178] sm:$0xff]
  %v75 = vld [vmem:[%s0 + $0x180] sm:$0xff]
  %v76 = vld [vmem:[%s0 + $0x188] sm:$0xff]
  %v77 = vld [vmem:[%s0 + $0x190] sm:$0xff]
  %v78 = vld [vmem:[%s0 + $0x198] sm:$0xff]
  %v79 = vld [vmem:[%s0 + $0x1a0] sm:$0xff]
  %v80 = vld [vmem:[%s0 + $0x1a8] sm:$0xff]
  %v81 = vld [vmem:[%s0 + $0x1b0] sm:$0xff]
  %v82 = vld [vmem:[%s0 + $0x1b8] sm:$0xff]
  %v83 = vld [vmem:[%s0 + $0x1c0] sm:$0xff]
  %v84 = vld [vmem:[%s0 + $0x1c8] sm:$0xff]
  %v85 = vld [vmem:[%s0 + $0x1d0] sm:$0xff]
  %v86 = vld [vmem:[%s0 + $0x1d8] sm:$0xff]
  %v87 = vld [vmem:[%s0 + $0x1e0] sm:$0xff]
  %v88 = vld [vmem:[%s0 + $0x1e8] sm:$0xff]
  %v89 = vld [vmem:[%s0 + $0x1f0] sm:$0xff]
  %v90 = vld [vmem:[%s0 + $0x1f8] sm:$0xff]
  %v91 = vld [vmem:[%s0 + $0x200] sm:$0xff]
  %v92 = vld [vmem:[%s0 + $0x208] sm:$0xff]
  %v93 = vld [vmem:[%s0 + $0x210] sm:$0xff]
  %v94 = vld [vmem:[%s0 + $0x218] sm:$0xff]
  %v95 = vld [vmem:[%s0 + $0x220] sm:$0xff]
  %v96 = vld [vmem:[%s0 + $0x228] sm:$0xff]
  %v97 = vld [vmem:[%s0 + $0x230] sm:$0xff]
  %v98 = vld [vmem:[%s0 + $0x238] sm:$0xff]
  %v99 = vld [vmem:[%s0 + $0x240] sm:$0xff]
  %v100 = vld [vmem:[%s0 + $0x248] sm:$0xff]
  %v101 = vld [vmem:[%s0 + $0x250] sm:$0xff]
  %v102 = vld [vmem:[%s0 + $0x258] sm:$0xff]
  %v103 = vld [vmem:[%s0 + $0x260] sm:$0xff]
  %v104 = vld [vmem:[%s0 + $0x268] sm:$0xff]
  %v105 = vld [vmem:[%s0 + $0x270] sm:$0xff]
  %v106 = vld [vmem:[%s0 + $0x278] sm:$0xff]
  %v107 = vld [vmem:[%s0 + $0x280] sm:$0xff]
  %v108 = vld [vmem:[%s0 + $0x288] sm:$0xff]
  %v109 = vld [vmem:[%s0 + $0x290] sm:$0xff]
  %v110 = vld [vmem:[%s0 + $0x298] sm:$0xff]
  %v111 = vld [vmem:[%s0 + $0x2a0] sm:$0xff]
  %v112 = vld [vmem:[%s0 + $0x2a8] sm:$0xff]
  %v113 = vld [vmem:[%s0 + $0x2b0] sm:$0xff]
  %v114 = vld [vmem:[%s0 + $0x2b8] sm:$0xff]
  %v115 = vld [vmem:[%s0 + $0x2c0] sm:$0xff]
  %v116 = vld [vmem:[%s0 + $0x2c8] sm:$0xff]
  %v117 = vld [vmem:[%s0 + $0x2d0] sm:$0xff]
  %v118 = vld [vmem:[%s0 + $0x2d8] sm:$0xff]
  %v119 = vld [vmem:[%s0 + $0x2e0] sm:$0xff]
  %v120 = vld [vmem:[%s0 + $0x2e8] sm:$0xff]
  %v121 = vld [vmem:[%s0 + $0x2f0] sm:$0xff]
  %v122 = vld [vmem:[%s0 + $0x2f8] sm:$0xff]
  %v123 = vld [vmem:[%s0 + $0x300] sm:$0xff]
  %v124 = vld [vmem:[%s0 + $0x308] sm:$0xff]
  %v125 = vld [vmem:[%s0 + $0x310] sm:$0xff]
  %v126 = vld [vmem:[%s0 + $0x318] sm:$0xff]
  %v127 = vld [vmem:[%s0 + $0x320] sm:$0xff]
  %v128 = vld [vmem:[%s0 + $0x328] sm:$0xff]
  %v129 = vld [vmem:[%s0 + $0x330] sm:$0xff]
  %v130 = vld [vmem:[%s0 + $0x338] sm:$0xff]
  %v131 = vld [vmem:[%s0 + $0x340] sm:$0xff]
  %v132 = vld [vmem:[%s0 + $0x348] sm:$0xff]
  %v133 = vld [vmem:[%s0 + $0x350] sm:$0xff]
  %v134 = vld [vmem:[%s0 + $0x358] sm:$0xff]
  %v135 = vld [vmem:[%s0 + $0x360] sm:$0xff]
  %v136 = vld [vmem:[%s0 + $0x368] sm:$0xff]
  %v137 = vld [vmem:[%s0 + $0x370] sm:$0xff]
  %v138 = vld [vmem:[%s0 + $0x378] sm:$0xff]
  %v139 = vld [vmem:[%s0 + $0x380] sm:$0xff]
  %v140 = vld [vmem:[%s0 + $0x388] sm:$0xff]
  %v141 = vld [vmem:[%s0 + $0x390] sm:$0xff]
  %v142 = vld [vmem:[%s0 + $0x398] sm:$0xff]
  %v143 = vld [vmem:[%s0 + $0x3a0] sm:$0xff]
  %v144 = vld [vmem:[%s0 + $0x3a8] sm:$0xff]
  %v145 = vld [vmem:[%s0 + $0x3b0] sm:$0xff]
  %v146 = vld [vmem:[%s0 + $0x3b8] sm:$0xff]
  %v147 = vld [vmem:[%s0 + $0x3c0] sm:$0xff]
  %v148 = vld [vmem:[%s0 + $0x3c8] sm:$0xff]
  %v149 = vld [vmem:[%s0 + $0x3d0] sm:$0xff]
  %v150 = vld [vmem:[%s0 + $0x3d8] sm:$0xff]
  %v151 = vld [vmem:[%s0 + $0x3e0] sm:$0xff]
  %v152 = vld [vmem:[%s0 + $0x3e8] sm:$0xff]
  %v153 = vld [vmem:[%s0 + $0x3f0] sm:$0xff]
  %v154 = vld [vmem:[%s0 + $0x3f8] sm:$0xff]
  %v155 = vld [vmem:[%s0 + $0x400] sm:$0xff]
  %v156 = vld [vmem:[%s0 + $0x408] sm:$0xff]
  %v157 = vld [vmem:[%s0 + $0x410] sm:$0xff]
  %v158 = vld [vmem:[%s0 + $0x418] sm:$0xff]
  %v159 = vld [vmem:[%s0 + $0x420] sm:$0xff]
  %v160 = vld [vmem:[%s0 + $0x428] sm:$0xff]
  %v161 = vld [vmem:[%s0 + $0x430] sm:$0xff]
  %v162 = vld [vmem:[%s0 + $0x438] sm:$0xff]
  %v163 = vld [vmem:[%s0 + $0x440] sm:$0xff]
  %v164 = vld [vmem:[%s0 + $0x448] sm:$0xff]
  %v165 = vld [vmem:[%s0 + $0x450] sm:$0xff]
  %v166 = vld [vmem:[%s0 + $0x458] sm:$0xff]
  %v167 = vld [vmem:[%s0 + $0x460] sm:$0xff]
  %v168 = vld [vmem:[%s0 + $0x468] sm:$0xff]
  %v169 = vld [vmem:[%s0 + $0x470] sm:$0xff]
  %v170 = vld [vmem:[%s0 + $0x478] sm:$0xff]
  %v171 = vld [vmem:[%s0 + $0x480] sm:$0xff]
  %v172 = vld [vmem:[%s0 + $0x488] sm:$0xff]
  %v173 = vld [vmem:[%s0 + $0x490] sm:$0xff]
  %v174 = vld [vmem:[%s0 + $0x498] sm:$0xff]
  %v175 = vld [vmem:[%s0 + $0x4a0] sm:$0xff]
  %v176 = vld [vmem:[%s0 + $0x4a8] sm:$0xff]
  %v177 = vld [vmem:[%s0 + $0x4b0] sm:$0xff]
  %v178 = vld [vmem:[%s0 + $0x4b8] sm:$0xff]
  %v179 = vld [vmem:[%s0 + $0x4c0] sm:$0xff]
  %v180 = vld [vmem:[%s0 + $0x4c8] sm:$0xff]
  %v181 = vld [vmem:[%s0 + $0x4d0] sm:$0xff]
  %v182 = vld [vmem:[%s0 + $0x4d8] sm:$0xff]
  %v183 = vld [vmem:[%s0 + $0x4e0] sm:$0xff]
  %v184 = vld [vmem:[%s0 + $0x4e8] sm:$0xff]
  %v185 = vld [vmem:[%s0 + $0x4f0] sm:$0xff]
  %v186 = vld [vmem:[%s0 + $0x4f8] sm:$0xff]
  %v187 = vld [vmem:[%s0 + $0x500] sm:$0xff]
  %v188 = vld [vmem:[%s0 + $0x508] sm:$0xff]
  %v189 = vld [vmem:[%s0 + $0x510] sm:$0xff]
  %v190 = vld [vmem:[%s0 + $0x518] sm:$0xff]
  %v191 = vld [vmem:[%s0 + $0x520] sm:$0xff]
  %v192 = vld [vmem:[%s0 + $0x528] sm:$0xff]
  %v193 = vld [vmem:[%s0 + $0x530] sm:$0xff]
  %v194 = vld [vmem:[%s0 + $0x538] sm:$0xff]
  %v195 = vld [vmem:[%s0 + $0x540] sm:$0xff]
  %v196 = vld [vmem:[%s0 + $0x548] sm:$0xff]
  %v197 = vld [vmem:[%s0 + $0x550] sm:$0xff]
  %v198 = vld [vmem:[%s0 + $0x558] sm:$0xff]
  %v199 = vld [vmem:[%s0 + $0x560] sm:$0xff]
  %v200 = vld [vmem:[%s0 + $0x568] sm:$0xff]
  %v201 = vld [vmem:[%s0 + $0x570] sm:$0xff]
  %v202 = vld [vmem:[%s0 + $0x578] sm:$0xff]
  %v203 = vld [vmem:[%s0 + $0x580] sm:$0xff]
  %v204 = vld [vmem:[%s0 + $0x588] sm:$0xff]
  %v205 = vld [vmem:[%s0 + $0x590] sm:$0xff]
  %v206 = vld [vmem:[%s0 + $0x598] sm:$0xff]
  %v207 = vld [vmem:[%s0 + $0x5a0] sm:$0xff]
  %v208 = vld [vmem:[%s0 + $0x5a8] sm:$0xff]
  %v209 = vld [vmem:[%s0 + $0x5b0] sm:$0xff]
  %v210 = vld [vmem:[%s0 + $0x5b8] sm:$0xff]
  %v211 = vld [vmem:[%s0 + $0x5c0] sm:$0xff]
  %v212 = vld [vmem:[%s0 + $0x5c8] sm:$0xff]
  %v213 = vld [vmem:[%s0 + $0x5d0] sm:$0xff]
  %v214 = vld [vmem:[%s0 + $0x5d8] sm:$0xff]
  %v215 = vld [vmem:[%s0 + $0x5e0] sm:$0xff]
  %v216 = vld [vmem:[%s0 + $0x5e8] sm:$0xff]
  %v217 = vld [vmem:[%s0 + $0x5f0] sm:$0xff]
  %v218 = vld [vmem:[%s0 + $0x5f8] sm:$0xff]
  %v219 = vld [vmem:[%s0 + $0x600] sm:$0xff]
  %v220 = vld [vmem:[%s0 + $0x608] sm:$0xff]
  %v221 = vld [vmem:[%s0 + $0x610] sm:$0xff]
  %v222 = vld [vmem:[%s0 + $0x618] sm:$0xff]
  %v223 = vld [vmem:[%s0 + $0x620] sm:$0xff]
  %v224 = vld [vmem:[%s0 + $0x628] sm:$0xff]
  %v225 = vld [vmem:[%s0 + $0x630] sm:$0xff]
  %v226 = vld [vmem:[%s0 + $0x638] sm:$0xff]
  %v227 = vld [vmem:[%s0 + $0x640] sm:$0xff]
  %v228 = vld [vmem:[%s0 + $0x648] sm:$0xff]
  %v229 = vld [vmem:[%s0 + $0x650] sm:$0xff]
  %v230 = vld [vmem:[%s0 + $0x658] sm:$0xff]
  %v231 = vld [vmem:[%s0 + $0x660] sm:$0xff]
  %v232 = vld [vmem:[%s0 + $0x668] sm:$0xff]
  %v233 = vld [vmem:[%s0 + $0x670] sm:$0xff]
  %v234 = vld [vmem:[%s0 + $0x678] sm:$0xff]
  %v235 = vld [vmem:[%s0 + $0x680] sm:$0xff]
  %v236 = vld [vmem:[%s0 + $0x688] sm:$0xff]
  %v237 = vld [vmem:[%s0 + $0x690] sm:$0xff]
  %v238 = vld [vmem:[%s0 + $0x698] sm:$0xff]
  %v239 = vld [vmem:[%s0 + $0x6a0] sm:$0xff]
  %v240 = vld [vmem:[%s0 + $0x6a8] sm:$0xff]
  %v241 = vld [vmem:[%s0 + $0x6b0] sm:$0xff]
  %v242 = vld [vmem:[%s0 + $0x6b8] sm:$0xff]
  %v243 = vld [vmem:[%s0 + $0x6c0] sm:$0xff]
  %v244 = vld [vmem:[%s0 + $0x6c8] sm:$0xff]
  %v245 = vld [vmem:[%s0 + $0x6d0] sm:$0xff]
  %v246 = vld [vmem:[%s0 + $0x6d8] sm:$0xff]
  %v247 = vld [vmem:[%s0 + $0x6e0] sm:$0xff]
  %v248 = vld [vmem:[%s0 + $0x6e8] sm:$0xff]
  %v249 = vld [vmem:[%s0 + $0x6f0] sm:$0xff]
  %v250 = vld [vmem:[%s0 + $0x6f8] sm:$0xff]
  %v251 = vld [vmem:[%s0 + $0x700] sm:$0xff]
  %v252 = vld [vmem:[%s0 + $0x708] sm:$0xff]
  %v253 = vld [vmem:[%s0 + $0x710] sm:$0xff]
  %v254 = vld [vmem:[%s0 + $0x718] sm:$0xff]
  %v255 = vld [vmem:[%s0 + $0x720] sm:$0xff]
  %v256 = vld [vmem:[%s0 + $0x728] sm:$0xff]
  %v257 = vld [vmem:[%s0 + $0x730] sm:$0xff]
  %v258 = vld [vmem:[%s0 + $0x738] sm:$0xff]
  %v259 = vld [vmem:[%s0 + $0x740] sm:$0xff]
  %v260 = vld [vmem:[%s0 + $0x748] sm:$0xff]
  %v261 = vld [vmem:[%s0 + $0x750] sm:$0xff]
  %v262 = vld [vmem:[%s0 + $0x758] sm:$0xff]
  %v263 = vld [vmem:[%s0 + $0x760] sm:$0xff]
  %v264 = vld [vmem:[%s0 + $0x768] sm:$0xff]
  %v265 = vld [vmem:[%s0 + $0x770] sm:$0xff]
  %v266 = vld [vmem:[%s0 + $0x778] sm:$0xff]
  %v267 = vld [vmem:[%s0 + $0x780] sm:$0xff]
  %v268 = vld [vmem:[%s0 + $0x788] sm:$0xff]
  %v269 = vld [vmem:[%s0 + $0x790] sm:$0xff]
  %v270 = vld [vmem:[%s0 + $0x798] sm:$0xff]
  %v271 = vld [vmem:[%s0 + $0x7a0] sm:$0xff]
  %v272 = vpack.c.bf16 %v32, %v27
  %v273 = vpack.c.bf16 %v33, %v28
  %v274 = vpack.c.bf16 %v34, %v29
  %v275 = vpack.c.bf16 %v35, %v30
  %v276 = vpack.c.bf16 %v36, %v31
  %v277 = vpack.c.bf16 %v42, %v37
  %v278 = vpack.c.bf16 %v43, %v38
  %v279 = vpack.c.bf16 %v44, %v39
  %v280 = vpack.c.bf16 %v45, %v40
  %v281 = vpack.c.bf16 %v46, %v41
  %v282 = vpack.c.bf16 %v52, %v47
  %v283 = vpack.c.bf16 %v53, %v48
  %v284 = vpack.c.bf16 %v54, %v49
  %v285 = vpack.c.bf16 %v55, %v50
  %v286 = vpack.c.bf16 %v56, %v51
  %v287 = vpack.c.bf16 %v62, %v57
  %v288 = vpack.c.bf16 %v63, %v58
  %v289 = vpack.c.bf16 %v64, %v59
  %v290 = vpack.c.bf16 %v65, %v60
  %v291 = vpack.c.bf16 %v66, %v61
  %v292 = vpack.c.bf16 %v72, %v67
  %v293 = vpack.c.bf16 %v73, %v68
  %v294 = vpack.c.bf16 %v74, %v69
  %v295 = vpack.c.bf16 %v75, %v70
  %v296 = vpack.c.bf16 %v76, %v71
  %v297 = vpack.c.bf16 %v82, %v77
  %v298 = vpack.c.bf16 %v83, %v78
  %v299 = vpack.c.bf16 %v84, %v79
  %v300 = vpack.c.bf16 %v85, %v80
  %v301 = vpack.c.bf16 %v86, %v81
  %v302 = vpack.c.bf16 %v92, %v87
  %v303 = vpack.c.bf16 %v93, %v88
  %v304 = vpack.c.bf16 %v94, %v89
  %v305 = vpack.c.bf16 %v95, %v90
  %v306 = vpack.c.bf16 %v96, %v91
  %v307 = vpack.c.bf16 %v102, %v97
  %v308 = vpack.c.bf16 %v103, %v98
  %v309 = vpack.c.bf16 %v104, %v99
  %v310 = vpack.c.bf16 %v105, %v100
  %v311 = vpack.c.bf16 %v106, %v101
  %v312 = vpack.c.bf16 %v112, %v107
  %v313 = vpack.c.bf16 %v113, %v108
  %v314 = vpack.c.bf16 %v114, %v109
  %v315 = vpack.c.bf16 %v115, %v110
  %v316 = vpack.c.bf16 %v116, %v111
  %v317 = vpack.c.bf16 %v122, %v117
  %v318 = vpack.c.bf16 %v123, %v118
  %v319 = vpack.c.bf16 %v124, %v119
  %v320 = vpack.c.bf16 %v125, %v120
  %v321 = vpack.c.bf16 %v126, %v121
  %v322 = vpack.c.bf16 %v132, %v127
  %v323 = vpack.c.bf16 %v133, %v128
  %v324 = vpack.c.bf16 %v134, %v129
  %v325 = vpack.c.bf16 %v135, %v130
  %v326 = vpack.c.bf16 %v136, %v131
  %v327 = vpack.c.bf16 %v142, %v137
  %v328 = vpack.c.bf16 %v143, %v138
  %v329 = vpack.c.bf16 %v144, %v139
  %v330 = vpack.c.bf16 %v145, %v140
  %v331 = vpack.c.bf16 %v146, %v141
  %v332 = vpack.c.bf16 %v152, %v147
  %v333 = vpack.c.bf16 %v153, %v148
  %v334 = vpack.c.bf16 %v154, %v149
  %v335 = vpack.c.bf16 %v155, %v150
  %v336 = vpack.c.bf16 %v156, %v151
  %v337 = vpack.c.bf16 %v162, %v157
  %v338 = vpack.c.bf16 %v163, %v158
  %v339 = vpack.c.bf16 %v164, %v159
  %v340 = vpack.c.bf16 %v165, %v160
  %v341 = vpack.c.bf16 %v166, %v161
  %v342 = vpack.c.bf16 %v172, %v167
  %v343 = vpack.c.bf16 %v173, %v168
  %v344 = vpack.c.bf16 %v174, %v169
  %v345 = vpack.c.bf16 %v175, %v170
  %v346 = vpack.c.bf16 %v176, %v171
  %v347 = vpack.c.bf16 %v182, %v177
  %v348 = vpack.c.bf16 %v183, %v178
  %v349 = vpack.c.bf16 %v184, %v179
  %v350 = vpack.c.bf16 %v185, %v180
  %v351 = vpack.c.bf16 %v186, %v181
  %v352 = vpack.c.bf16 %v192, %v187
  %v353 = vpack.c.bf16 %v193, %v188
  %v354 = vpack.c.bf16 %v194, %v189
  %v355 = vpack.c.bf16 %v195, %v190
  %v356 = vpack.c.bf16 %v196, %v191
  %v357 = vpack.c.bf16 %v202, %v197
  %v358 = vpack.c.bf16 %v203, %v198
  %v359 = vpack.c.bf16 %v204, %v199
  %v360 = vpack.c.bf16 %v205, %v200
  %v361 = vpack.c.bf16 %v206, %v201
  %v362 = vpack.c.bf16 %v212, %v207
  %v363 = vpack.c.bf16 %v213, %v208
  %v364 = vpack.c.bf16 %v214, %v209
  %v365 = vpack.c.bf16 %v215, %v210
  %v366 = vpack.c.bf16 %v216, %v211
  %v367 = vpack.c.bf16 %v222, %v217
  %v368 = vpack.c.bf16 %v223, %v218
  %v369 = vpack.c.bf16 %v224, %v219
  %v370 = vpack.c.bf16 %v225, %v220
  %v371 = vpack.c.bf16 %v226, %v221
  %v372 = vpack.c.bf16 %v232, %v227
  %v373 = vpack.c.bf16 %v233, %v228
  %v374 = vpack.c.bf16 %v234, %v229
  %v375 = vpack.c.bf16 %v235, %v230
  %v376 = vpack.c.bf16 %v236, %v231
  %v377 = vpack.c.bf16 %v242, %v237
  %v378 = vpack.c.bf16 %v243, %v238
  %v379 = vpack.c.bf16 %v244, %v239
  %v380 = vpack.c.bf16 %v245, %v240
  %v381 = vpack.c.bf16 %v246, %v241
  %v382 = vpack.c.bf16 %v252, %v247
  %v383 = vpack.c.bf16 %v253, %v248
  %v384 = vpack.c.bf16 %v254, %v249
  %v385 = vpack.c.bf16 %v255, %v250
  %v386 = vpack.c.bf16 %v256, %v251
  %v387 = vpack.c.bf16 %v262, %v257
  %v388 = vpack.c.bf16 %v263, %v258
  %v389 = vpack.c.bf16 %v264, %v259
  %v390 = vpack.c.bf16 %v265, %v260
  %v391 = vpack.c.bf16 %v266, %v261
  %v392 = vpack.c.bf16 %v267, %v267
  %v393 = vpack.c.bf16 %v268, %v268
  %v394 = vpack.c.bf16 %v269, %v269
  %v395 = vpack.c.bf16 %v270, %v270
  %v396 = vpack.c.bf16 %v271, %v271
  %v397 = vld [vmem:[%s1] sm:$0xf]
  %v398 = vld [vmem:[%s1 + $0x4] sm:$0xf]
  %v399 = vld [vmem:[%s1 + $0x8] sm:$0xf]
  %v400 = vld [vmem:[%s1 + $0xc] sm:$0xf]
  %v401 = vld [vmem:[%s1 + $0x10] sm:$0xf]
  %v402 = vld [vmem:[%s1 + $0x14] sm:$0xf]
  %v403 = vld [vmem:[%s1 + $0x18] sm:$0xf]
  %v404 = vld [vmem:[%s1 + $0x1c] sm:$0xf]
  %v405 = vld [vmem:[%s1 + $0x20] sm:$0xf]
  %v406 = vld [vmem:[%s1 + $0x24] sm:$0xf]
  %v407 = vld [vmem:[%s1 + $0x28] sm:$0xf]
  %v408 = vld [vmem:[%s1 + $0x2c] sm:$0xf]
  %v409 = vld [vmem:[%s1 + $0x30] sm:$0xf]
  %v410 = vld [vmem:[%s1 + $0x34] sm:$0xf]
  %v411 = vld [vmem:[%s1 + $0x38] sm:$0xf]
  %v412 = vld [vmem:[%s1 + $0x3c] sm:$0xf]
  %v413 = vld [vmem:[%s1 + $0x40] sm:$0xf]
  %v414 = vld [vmem:[%s1 + $0x44] sm:$0xf]
  %v415 = vld [vmem:[%s1 + $0x48] sm:$0xf]
  %v416 = vld [vmem:[%s1 + $0x4c] sm:$0xf]
  %v417 = vld [vmem:[%s1 + $0x50] sm:$0xf]
  %v418 = vld [vmem:[%s1 + $0x54] sm:$0xf]
  %v419 = vld [vmem:[%s1 + $0x58] sm:$0xf]
  %v420 = vld [vmem:[%s1 + $0x5c] sm:$0xf]
  %v421 = vld [vmem:[%s1 + $0x60] sm:$0xf]
  %v422 = vld [vmem:[%s1 + $0x64] sm:$0xf]
  %v423 = vld [vmem:[%s1 + $0x68] sm:$0xf]
  %v424 = vld [vmem:[%s1 + $0x6c] sm:$0xf]
  %v425 = vld [vmem:[%s1 + $0x70] sm:$0xf]
  %v426 = vld [vmem:[%s1 + $0x74] sm:$0xf]
  %v427 = vld [vmem:[%s1 + $0x78] sm:$0xf]
  %v428 = vld [vmem:[%s1 + $0x7c] sm:$0xf]
  %v429 = vld [vmem:[%s1 + $0x80] sm:$0xf]
  %v430 = vld [vmem:[%s1 + $0x84] sm:$0xf]
  %v431 = vld [vmem:[%s1 + $0x88] sm:$0xf]
  %v432 = vld [vmem:[%s1 + $0x8c] sm:$0xf]
  %v433 = vld [vmem:[%s1 + $0x90] sm:$0xf]
  %v434 = vld [vmem:[%s1 + $0x94] sm:$0xf]
  %v435 = vld [vmem:[%s1 + $0x98] sm:$0xf]
  %v436 = vld [vmem:[%s1 + $0x9c] sm:$0xf]
  %v437 = vld [vmem:[%s1 + $0xa0] sm:$0xf]
  %v438 = vld [vmem:[%s1 + $0xa4] sm:$0xf]
  %v439 = vld [vmem:[%s1 + $0xa8] sm:$0xf]
  %v440 = vld [vmem:[%s1 + $0xac] sm:$0xf]
  %v441 = vld [vmem:[%s1 + $0xb0] sm:$0xf]
  %v442 = vld [vmem:[%s1 + $0xb4] sm:$0xf]
  %v443 = vld [vmem:[%s1 + $0xb8] sm:$0xf]
  %v444 = vld [vmem:[%s1 + $0xbc] sm:$0xf]
  %v445 = vld [vmem:[%s1 + $0xc0] sm:$0xf]
  %v446 = vld [vmem:[%s1 + $0xc4] sm:$0xf]
  %v447 = vld [vmem:[%s1 + $0xc8] sm:$0xf]
  %v448 = vld [vmem:[%s1 + $0xcc] sm:$0xf]
  %v449 = vld [vmem:[%s1 + $0xd0] sm:$0xf]
  %v450 = vld [vmem:[%s1 + $0xd4] sm:$0xf]
  %v451 = vld [vmem:[%s1 + $0xd8] sm:$0xf]
  %v452 = vld [vmem:[%s1 + $0xdc] sm:$0xf]
  %v453 = vld [vmem:[%s1 + $0xe0] sm:$0xf]
  %v454 = vld [vmem:[%s1 + $0xe4] sm:$0xf]
  %v455 = vld [vmem:[%s1 + $0xe8] sm:$0xf]
  %v456 = vld [vmem:[%s1 + $0xec] sm:$0xf]
  %v457 = vld [vmem:[%s1 + $0xf0] sm:$0xf]
  %v458 = vld [vmem:[%s1 + $0xf4] sm:$0xf]
  %v459 = vld [vmem:[%s1 + $0xf8] sm:$0xf]
  %v460 = vld [vmem:[%s1 + $0xfc] sm:$0xf]
  %v461 = vld [vmem:[%s1 + $0x100] sm:$0x7]
  %v462 = vld [vmem:[%s2] sm:$0x1]
  %v464 = vlaneseq
  %v465 = vshrl.u32 %v464, 7
  %v466 = vsub.s32 0, %v465
  %v467 = vrot.slane %v462, %v466
  %v534 = vunpack.c.l.b16 %v397
  %v535 = vunpack.c.l.b16 %v398
  %v536 = vunpack.c.l.b16 %v399
  %v537 = vunpack.c.l.b16 %v400
  %v538 = vunpack.c.l.b16 %v401
  %v539 = vunpack.c.l.b16 %v402
  %v540 = vunpack.c.l.b16 %v403
  %v541 = vunpack.c.l.b16 %v404
  %v542 = vunpack.c.l.b16 %v405
  %v543 = vunpack.c.l.b16 %v406
  %v544 = vunpack.c.l.b16 %v407
  %v545 = vunpack.c.l.b16 %v408
  %v546 = vunpack.c.l.b16 %v409
  %v547 = vunpack.c.l.b16 %v410
  %v548 = vunpack.c.l.b16 %v411
  %v549 = vunpack.c.l.b16 %v412
  %v550 = vunpack.c.l.b16 %v413
  %v551 = vunpack.c.l.b16 %v414
  %v552 = vunpack.c.l.b16 %v415
  %v553 = vunpack.c.l.b16 %v416
  %v554 = vunpack.c.l.b16 %v417
  %v555 = vunpack.c.l.b16 %v418
  %v556 = vunpack.c.l.b16 %v419
  %v557 = vunpack.c.l.b16 %v420
  %v558 = vunpack.c.l.b16 %v421
  %v559 = vunpack.c.l.b16 %v422
  %v560 = vunpack.c.l.b16 %v423
  %v561 = vunpack.c.l.b16 %v424
  %v562 = vunpack.c.l.b16 %v425
  %v563 = vunpack.c.l.b16 %v426
  %v564 = vunpack.c.l.b16 %v427
  %v565 = vunpack.c.l.b16 %v428
  %v566 = vunpack.c.l.b16 %v429
  %v567 = vunpack.c.l.b16 %v430
  %v568 = vunpack.c.l.b16 %v431
  %v569 = vunpack.c.l.b16 %v432
  %v570 = vunpack.c.l.b16 %v433
  %v571 = vunpack.c.l.b16 %v434
  %v572 = vunpack.c.l.b16 %v435
  %v573 = vunpack.c.l.b16 %v436
  %v574 = vunpack.c.l.b16 %v437
  %v575 = vunpack.c.l.b16 %v438
  %v576 = vunpack.c.l.b16 %v439
  %v577 = vunpack.c.l.b16 %v440
  %v578 = vunpack.c.l.b16 %v441
  %v579 = vunpack.c.l.b16 %v442
  %v580 = vunpack.c.l.b16 %v443
  %v581 = vunpack.c.l.b16 %v444
  %v582 = vunpack.c.l.b16 %v445
  %v583 = vunpack.c.l.b16 %v446
  %v584 = vunpack.c.l.b16 %v447
  %v585 = vunpack.c.l.b16 %v448
  %v586 = vunpack.c.l.b16 %v449
  %v587 = vunpack.c.l.b16 %v450
  %v588 = vunpack.c.l.b16 %v451
  %v589 = vunpack.c.l.b16 %v452
  %v590 = vunpack.c.l.b16 %v453
  %v591 = vunpack.c.l.b16 %v454
  %v592 = vunpack.c.l.b16 %v455
  %v593 = vunpack.c.l.b16 %v456
  %v594 = vunpack.c.l.b16 %v457
  %v595 = vunpack.c.l.b16 %v458
  %v596 = vunpack.c.l.b16 %v459
  %v597 = vunpack.c.l.b16 %v460
  %v598 = vunpack.c.l.b16 %v461
  %v599 = vpack.c.b16 %v535, %v534
  %v600 = vpack.c.b16 %v537, %v536
  %v601 = vpack.c.b16 %v539, %v538
  %v602 = vpack.c.b16 %v541, %v540
  %v603 = vpack.c.b16 %v543, %v542
  %v604 = vpack.c.b16 %v545, %v544
  %v605 = vpack.c.b16 %v547, %v546
  %v606 = vpack.c.b16 %v549, %v548
  %v607 = vpack.c.b16 %v551, %v550
  %v608 = vpack.c.b16 %v553, %v552
  %v609 = vpack.c.b16 %v555, %v554
  %v610 = vpack.c.b16 %v557, %v556
  %v611 = vpack.c.b16 %v559, %v558
  %v612 = vpack.c.b16 %v561, %v560
  %v613 = vpack.c.b16 %v563, %v562
  %v614 = vpack.c.b16 %v565, %v564
  %v615 = vpack.c.b16 %v567, %v566
  %v616 = vpack.c.b16 %v569, %v568
  %v617 = vpack.c.b16 %v571, %v570
  %v618 = vpack.c.b16 %v573, %v572
  %v619 = vpack.c.b16 %v575, %v574
  %v620 = vpack.c.b16 %v577, %v576
  %v621 = vpack.c.b16 %v579, %v578
  %v622 = vpack.c.b16 %v581, %v580
  %v623 = vpack.c.b16 %v583, %v582
  %v624 = vpack.c.b16 %v585, %v584
  %v625 = vpack.c.b16 %v587, %v586
  %v626 = vpack.c.b16 %v589, %v588
  %v627 = vpack.c.b16 %v591, %v590
  %v628 = vpack.c.b16 %v593, %v592
  %v629 = vpack.c.b16 %v595, %v594
  %v630 = vpack.c.b16 %v597, %v596
  %v631 = vpack.c.b16 %v598, %v598
  %vm664 = vcmask 39936
  %v666 = vsel %vm664, %v276, 0
  %v669 = vsel %vm664, %v281, 0
  %v672 = vsel %vm664, %v286, 0
  %v675 = vsel %vm664, %v291, 0
  %v678 = vsel %vm664, %v296, 0
  %v681 = vsel %vm664, %v301, 0
  %v684 = vsel %vm664, %v306, 0
  %v687 = vsel %vm664, %v311, 0
  %v690 = vsel %vm664, %v316, 0
  %v693 = vsel %vm664, %v321, 0
  %v696 = vsel %vm664, %v326, 0
  %v699 = vsel %vm664, %v331, 0
  %v702 = vsel %vm664, %v336, 0
  %v705 = vsel %vm664, %v341, 0
  %v708 = vsel %vm664, %v346, 0
  %v711 = vsel %vm664, %v351, 0
  %v714 = vsel %vm664, %v356, 0
  %v717 = vsel %vm664, %v361, 0
  %v720 = vsel %vm664, %v366, 0
  %v723 = vsel %vm664, %v371, 0
  %v726 = vsel %vm664, %v376, 0
  %v729 = vsel %vm664, %v381, 0
  %v732 = vsel %vm664, %v386, 0
  %v735 = vsel %vm664, %v391, 0
  %v738 = vsel %vm664, %v396, 0
  %vm740 = vcmask 1041408
  %vm741 = vcmask 1042432
  %v742 = vsel %vm740, 4294967295, 65535
  %v743 = vsel %vm741, %v742, 0
  %v745 = vand.u32 %v631, %v743
  %747 = vmatprep.subr.bf16.mxu0 0
  %748 = vmatpush1.bf16.msra.mxu0 %v599
  %749 = vmatprep.subr.bf16.mxu0 0
  %750 = vmatpush1.bf16.msra.mxu0 %v600
  %751 = vmatprep.subr.bf16.mxu0 0
  %752 = vmatpush1.bf16.msra.mxu0 %v601
  %753 = vmatprep.subr.bf16.mxu0 0
  %754 = vmatpush1.bf16.msra.mxu0 %v602
  %755 = vmatprep.subr.bf16.mxu0 0
  %756 = vmatpush1.bf16.msra.mxu0 %v603
  %757 = vmatprep.subr.bf16.mxu0 0
  %758 = vmatpush1.bf16.msra.mxu0 %v604
  %759 = vmatprep.subr.bf16.mxu0 0
  %760 = vmatpush1.bf16.msra.mxu0 %v605
  %761 = vmatprep.subr.bf16.mxu0 0
  %762 = vmatpush1.bf16.msra.mxu0 %v606
  %763 = vmatprep.subr.bf16.mxu0 0
  %764 = vmatpush1.bf16.msra.mxu0 %v607
  %765 = vmatprep.subr.bf16.mxu0 0
  %766 = vmatpush1.bf16.msra.mxu0 %v608
  %767 = vmatprep.subr.bf16.mxu0 0
  %768 = vmatpush1.bf16.msra.mxu0 %v609
  %769 = vmatprep.subr.bf16.mxu0 0
  %770 = vmatpush1.bf16.msra.mxu0 %v610
  %771 = vmatprep.subr.bf16.mxu0 0
  %772 = vmatpush1.bf16.msra.mxu0 %v611
  %773 = vmatprep.subr.bf16.mxu0 0
  %774 = vmatpush1.bf16.msra.mxu0 %v612
  %775 = vmatprep.subr.bf16.mxu0 0
  %776 = vmatpush1.bf16.msra.mxu0 %v613
  %777 = vmatprep.subr.bf16.mxu0 0
  %778 = vmatpush1.bf16.msra.mxu0 %v614
  %779 = vmatprep.mubr.bf16.mxu0 %v273
  %780 = vmatmul.mubr.bf16.gmra.mrb[0].mxu0 %v272
  %v781 = vpop.f32.mrb[0].mxu0
  %v782 = vadd.f32 %v467, %v781
  %v783 = vpop.f32.mrb[0].mxu0
  %v784 = vpop.f32.mrb[0].mxu0
  %v785 = vadd.f32 %v467, %v784
  %v786 = vpop.f32.mrb[0].mxu0
  %787 = vmatprep.mubr.bf16.mxu0 %v278
  %788 = vmatmul.mubr.bf16.gmra.mrb[0].mxu0 %v277
  %v789 = vpop.f32.mrb[0].mxu0
  %v790 = vadd.f32 %v467, %v789
  %v791 = vpop.f32.mrb[0].mxu0
  %v792 = vpop.f32.mrb[0].mxu0
  %v793 = vadd.f32 %v467, %v792
  %v794 = vpop.f32.mrb[0].mxu0
  %795 = vmatprep.mubr.bf16.mxu0 %v283
  %796 = vmatmul.mubr.bf16.gmra.mrb[0].mxu0 %v282
  %v797 = vpop.f32.mrb[0].mxu0
  %v798 = vadd.f32 %v467, %v797
  %v799 = vpop.f32.mrb[0].mxu0
  %v800 = vpop.f32.mrb[0].mxu0
  %v801 = vadd.f32 %v467, %v800
  %v802 = vpop.f32.mrb[0].mxu0
  %803 = vmatprep.mubr.bf16.mxu0 %v288
  %804 = vmatmul.mubr.bf16.gmra.mrb[0].mxu0 %v287
  %v805 = vpop.f32.mrb[0].mxu0
  %v806 = vadd.f32 %v467, %v805
  %v807 = vpop.f32.mrb[0].mxu0
  %v808 = vpop.f32.mrb[0].mxu0
  %v809 = vadd.f32 %v467, %v808
  %v810 = vpop.f32.mrb[0].mxu0
  %811 = vmatprep.mubr.bf16.mxu0 %v293
  %812 = vmatmul.mubr.bf16.gmra.mrb[0].mxu0 %v292
  %v813 = vpop.f32.mrb[0].mxu0
  %v814 = vadd.f32 %v467, %v813
  %v815 = vpop.f32.mrb[0].mxu0
  %v816 = vpop.f32.mrb[0].mxu0
  %v817 = vadd.f32 %v467, %v816
  %v818 = vpop.f32.mrb[0].mxu0
  %819 = vmatprep.mubr.bf16.mxu0 %v298
  %820 = vmatmul.mubr.bf16.gmra.mrb[0].mxu0 %v297
  %v821 = vpop.f32.mrb[0].mxu0
  %v822 = vadd.f32 %v467, %v821
  %v823 = vpop.f32.mrb[0].mxu0
  %v824 = vpop.f32.mrb[0].mxu0
  %v825 = vadd.f32 %v467, %v824
  %v826 = vpop.f32.mrb[0].mxu0
  %827 = vmatprep.mubr.bf16.mxu0 %v303
  %828 = vmatmul.mubr.bf16.gmra.mrb[0].mxu0 %v302
  %v829 = vpop.f32.mrb[0].mxu0
  %v830 = vadd.f32 %v467, %v829
  %v831 = vpop.f32.mrb[0].mxu0
  %v832 = vpop.f32.mrb[0].mxu0
  %v833 = vadd.f32 %v467, %v832
  %v834 = vpop.f32.mrb[0].mxu0
  %835 = vmatprep.mubr.bf16.mxu0 %v308
  %836 = vmatmul.mubr.bf16.gmra.mrb[0].mxu0 %v307
  %v837 = vpop.f32.mrb[0].mxu0
  %v838 = vadd.f32 %v467, %v837
  %v839 = vpop.f32.mrb[0].mxu0
  %v840 = vpop.f32.mrb[0].mxu0
  %v841 = vadd.f32 %v467, %v840
  %v842 = vpop.f32.mrb[0].mxu0
  %843 = vmatprep.mubr.bf16.mxu0 %v313
  %844 = vmatmul.mubr.bf16.gmra.mrb[0].mxu0 %v312
  %v845 = vpop.f32.mrb[0].mxu0
  %v846 = vadd.f32 %v467, %v845
  %v847 = vpop.f32.mrb[0].mxu0
  %v848 = vpop.f32.mrb[0].mxu0
  %v849 = vadd.f32 %v467, %v848
  %v850 = vpop.f32.mrb[0].mxu0
  %851 = vmatprep.mubr.bf16.mxu0 %v318
  %852 = vmatmul.mubr.bf16.gmra.mrb[0].mxu0 %v317
  %v853 = vpop.f32.mrb[0].mxu0
  %v854 = vadd.f32 %v467, %v853
  %v855 = vpop.f32.mrb[0].mxu0
  %v856 = vpop.f32.mrb[0].mxu0
  %v857 = vadd.f32 %v467, %v856
  %v858 = vpop.f32.mrb[0].mxu0
  %859 = vmatprep.mubr.bf16.mxu0 %v323
  %860 = vmatmul.mubr.bf16.gmra.mrb[0].mxu0 %v322
  %v861 = vpop.f32.mrb[0].mxu0
  %v862 = vadd.f32 %v467, %v861
  %v863 = vpop.f32.mrb[0].mxu0
  %v864 = vpop.f32.mrb[0].mxu0
  %v865 = vadd.f32 %v467, %v864
  %v866 = vpop.f32.mrb[0].mxu0
  %867 = vmatprep.mubr.bf16.mxu0 %v328
  %868 = vmatmul.mubr.bf16.gmra.mrb[0].mxu0 %v327
  %v869 = vpop.f32.mrb[0].mxu0
  %v870 = vadd.f32 %v467, %v869
  %v871 = vpop.f32.mrb[0].mxu0
  %v872 = vpop.f32.mrb[0].mxu0
  %v873 = vadd.f32 %v467, %v872
  %v874 = vpop.f32.mrb[0].mxu0
  %875 = vmatprep.mubr.bf16.mxu0 %v333
  %876 = vmatmul.mubr.bf16.gmra.mrb[0].mxu0 %v332
  %v877 = vpop.f32.mrb[0].mxu0
  %v878 = vadd.f32 %v467, %v877
  %v879 = vpop.f32.mrb[0].mxu0
  %v880 = vpop.f32.mrb[0].mxu0
  %v881 = vadd.f32 %v467, %v880
  %v882 = vpop.f32.mrb[0].mxu0
  %883 = vmatprep.mubr.bf16.mxu0 %v338
  %884 = vmatmul.mubr.bf16.gmra.mrb[0].mxu0 %v337
  %v885 = vpop.f32.mrb[0].mxu0
  %v886 = vadd.f32 %v467, %v885
  %v887 = vpop.f32.mrb[0].mxu0
  %v888 = vpop.f32.mrb[0].mxu0
  %v889 = vadd.f32 %v467, %v888
  %v890 = vpop.f32.mrb[0].mxu0
  %891 = vmatprep.mubr.bf16.mxu0 %v343
  %892 = vmatmul.mubr.bf16.gmra.mrb[0].mxu0 %v342
  %v893 = vpop.f32.mrb[0].mxu0
  %v894 = vadd.f32 %v467, %v893
  %v895 = vpop.f32.mrb[0].mxu0
  %v896 = vpop.f32.mrb[0].mxu0
  %v897 = vadd.f32 %v467, %v896
  %v898 = vpop.f32.mrb[0].mxu0
  %899 = vmatprep.mubr.bf16.mxu0 %v348
  %900 = vmatmul.mubr.bf16.gmra.mrb[0].mxu0 %v347
  %v901 = vpop.f32.mrb[0].mxu0
  %v902 = vadd.f32 %v467, %v901
  %v903 = vpop.f32.mrb[0].mxu0
  %v904 = vpop.f32.mrb[0].mxu0
  %v905 = vadd.f32 %v467, %v904
  %v906 = vpop.f32.mrb[0].mxu0
  %907 = vmatprep.mubr.bf16.mxu0 %v353
  %908 = vmatmul.mubr.bf16.gmra.mrb[0].mxu0 %v352
  %v909 = vpop.f32.mrb[0].mxu0
  %v910 = vadd.f32 %v467, %v909
  %v911 = vpop.f32.mrb[0].mxu0
  %v912 = vpop.f32.mrb[0].mxu0
  %v913 = vadd.f32 %v467, %v912
  %v914 = vpop.f32.mrb[0].mxu0
  %915 = vmatprep.mubr.bf16.mxu0 %v358
  %916 = vmatmul.mubr.bf16.gmra.mrb[0].mxu0 %v357
  %v917 = vpop.f32.mrb[0].mxu0
  %v918 = vadd.f32 %v467, %v917
  %v919 = vpop.f32.mrb[0].mxu0
  %v920 = vpop.f32.mrb[0].mxu0
  %v921 = vadd.f32 %v467, %v920
  %v922 = vpop.f32.mrb[0].mxu0
  %923 = vmatprep.mubr.bf16.mxu0 %v363
  %924 = vmatmul.mubr.bf16.gmra.mrb[0].mxu0 %v362
  %v925 = vpop.f32.mrb[0].mxu0
  %v926 = vadd.f32 %v467, %v925
  %v927 = vpop.f32.mrb[0].mxu0
  %v928 = vpop.f32.mrb[0].mxu0
  %v929 = vadd.f32 %v467, %v928
  %v930 = vpop.f32.mrb[0].mxu0
  %931 = vmatprep.mubr.bf16.mxu0 %v368
  %932 = vmatmul.mubr.bf16.gmra.mrb[0].mxu0 %v367
  %v933 = vpop.f32.mrb[0].mxu0
  %v934 = vadd.f32 %v467, %v933
  %v935 = vpop.f32.mrb[0].mxu0
  %v936 = vpop.f32.mrb[0].mxu0
  %v937 = vadd.f32 %v467, %v936
  %v938 = vpop.f32.mrb[0].mxu0
  %939 = vmatprep.mubr.bf16.mxu0 %v373
  %940 = vmatmul.mubr.bf16.gmra.mrb[0].mxu0 %v372
  %v941 = vpop.f32.mrb[0].mxu0
  %v942 = vadd.f32 %v467, %v941
  %v943 = vpop.f32.mrb[0].mxu0
  %v944 = vpop.f32.mrb[0].mxu0
  %v945 = vadd.f32 %v467, %v944
  %v946 = vpop.f32.mrb[0].mxu0
  %947 = vmatprep.mubr.bf16.mxu0 %v378
  %948 = vmatmul.mubr.bf16.gmra.mrb[0].mxu0 %v377
  %v949 = vpop.f32.mrb[0].mxu0
  %v950 = vadd.f32 %v467, %v949
  %v951 = vpop.f32.mrb[0].mxu0
  %v952 = vpop.f32.mrb[0].mxu0
  %v953 = vadd.f32 %v467, %v952
  %v954 = vpop.f32.mrb[0].mxu0
  %955 = vmatprep.mubr.bf16.mxu0 %v383
  %956 = vmatmul.mubr.bf16.gmra.mrb[0].mxu0 %v382
  %v957 = vpop.f32.mrb[0].mxu0
  %v958 = vadd.f32 %v467, %v957
  %v959 = vpop.f32.mrb[0].mxu0
  %v960 = vpop.f32.mrb[0].mxu0
  %v961 = vadd.f32 %v467, %v960
  %v962 = vpop.f32.mrb[0].mxu0
  %963 = vmatprep.mubr.bf16.mxu0 %v388
  %964 = vmatmul.mubr.bf16.gmra.mrb[0].mxu0 %v387
  %v965 = vpop.f32.mrb[0].mxu0
  %v966 = vadd.f32 %v467, %v965
  %v967 = vpop.f32.mrb[0].mxu0
  %v968 = vpop.f32.mrb[0].mxu0
  %v969 = vadd.f32 %v467, %v968
  %v970 = vpop.f32.mrb[0].mxu0
  %971 = vmatprep.mubr.bf16.mxu0 %v393
  %972 = vmatmul.mubr.bf16.gmra.mrb[0].mxu0 %v392
  %v973 = vpop.f32.mrb[0].mxu0
  %v974 = vadd.f32 %v467, %v973
  %v975 = vpop.f32.mrb[0].mxu0
  %v976 = vpop.f32.mrb[0].mxu0
  %v977 = vpop.f32.mrb[0].mxu0
  %978 = vdwg.mxu0
  %979 = vmatprep.subr.bf16.mxu0 0
  %980 = vmatpush1.bf16.msra.mxu0 %v615
  %981 = vmatprep.subr.bf16.mxu0 0
  %982 = vmatpush1.bf16.msra.mxu0 %v616
  %983 = vmatprep.subr.bf16.mxu0 0
  %984 = vmatpush1.bf16.msra.mxu0 %v617
  %985 = vmatprep.subr.bf16.mxu0 0
  %986 = vmatpush1.bf16.msra.mxu0 %v618
  %987 = vmatprep.subr.bf16.mxu0 0
  %988 = vmatpush1.bf16.msra.mxu0 %v619
  %989 = vmatprep.subr.bf16.mxu0 0
  %990 = vmatpush1.bf16.msra.mxu0 %v620
  %991 = vmatprep.subr.bf16.mxu0 0
  %992 = vmatpush1.bf16.msra.mxu0 %v621
  %993 = vmatprep.subr.bf16.mxu0 0
  %994 = vmatpush1.bf16.msra.mxu0 %v622
  %995 = vmatprep.subr.bf16.mxu0 0
  %996 = vmatpush1.bf16.msra.mxu0 %v623
  %997 = vmatprep.subr.bf16.mxu0 0
  %998 = vmatpush1.bf16.msra.mxu0 %v624
  %999 = vmatprep.subr.bf16.mxu0 0
  %1000 = vmatpush1.bf16.msra.mxu0 %v625
  %1001 = vmatprep.subr.bf16.mxu0 0
  %1002 = vmatpush1.bf16.msra.mxu0 %v626
  %1003 = vmatprep.subr.bf16.mxu0 0
  %1004 = vmatpush1.bf16.msra.mxu0 %v627
  %1005 = vmatprep.subr.bf16.mxu0 0
  %1006 = vmatpush1.bf16.msra.mxu0 %v628
  %1007 = vmatprep.subr.bf16.mxu0 0
  %1008 = vmatpush1.bf16.msra.mxu0 %v629
  %1009 = vmatprep.subr.bf16.mxu0 0
  %1010 = vmatpush1.bf16.msra.mxu0 %v630
  %1011 = vmatprep.mubr.bf16.mxu0 %v275
  %1012 = vmatmul.mubr.bf16.gmra.mrb[0].mxu0 %v274
  %v1013 = vpop.f32.mrb[0].mxu0
  %v1014 = vadd.f32 %v782, %v1013
  %v1015 = vpop.f32.mrb[0].mxu0
  %v1016 = vpop.f32.mrb[0].mxu0
  %v1017 = vadd.f32 %v785, %v1016
  %v1018 = vpop.f32.mrb[0].mxu0
  %1019 = vmatprep.mubr.bf16.mxu0 %v280
  %1020 = vmatmul.mubr.bf16.gmra.mrb[0].mxu0 %v279
  %v1021 = vpop.f32.mrb[0].mxu0
  %v1022 = vadd.f32 %v790, %v1021
  %v1023 = vpop.f32.mrb[0].mxu0
  %v1024 = vpop.f32.mrb[0].mxu0
  %v1025 = vadd.f32 %v793, %v1024
  %v1026 = vpop.f32.mrb[0].mxu0
  %1027 = vmatprep.mubr.bf16.mxu0 %v285
  %1028 = vmatmul.mubr.bf16.gmra.mrb[0].mxu0 %v284
  %v1029 = vpop.f32.mrb[0].mxu0
  %v1030 = vadd.f32 %v798, %v1029
  %v1031 = vpop.f32.mrb[0].mxu0
  %v1032 = vpop.f32.mrb[0].mxu0
  %v1033 = vadd.f32 %v801, %v1032
  %v1034 = vpop.f32.mrb[0].mxu0
  %1035 = vmatprep.mubr.bf16.mxu0 %v290
  %1036 = vmatmul.mubr.bf16.gmra.mrb[0].mxu0 %v289
  %v1037 = vpop.f32.mrb[0].mxu0
  %v1038 = vadd.f32 %v806, %v1037
  %v1039 = vpop.f32.mrb[0].mxu0
  %v1040 = vpop.f32.mrb[0].mxu0
  %v1041 = vadd.f32 %v809, %v1040
  %v1042 = vpop.f32.mrb[0].mxu0
  %1043 = vmatprep.mubr.bf16.mxu0 %v295
  %1044 = vmatmul.mubr.bf16.gmra.mrb[0].mxu0 %v294
  %v1045 = vpop.f32.mrb[0].mxu0
  %v1046 = vadd.f32 %v814, %v1045
  %v1047 = vpop.f32.mrb[0].mxu0
  %v1048 = vpop.f32.mrb[0].mxu0
  %v1049 = vadd.f32 %v817, %v1048
  %v1050 = vpop.f32.mrb[0].mxu0
  %1051 = vmatprep.mubr.bf16.mxu0 %v300
  %1052 = vmatmul.mubr.bf16.gmra.mrb[0].mxu0 %v299
  %v1053 = vpop.f32.mrb[0].mxu0
  %v1054 = vadd.f32 %v822, %v1053
  %v1055 = vpop.f32.mrb[0].mxu0
  %v1056 = vpop.f32.mrb[0].mxu0
  %v1057 = vadd.f32 %v825, %v1056
  %v1058 = vpop.f32.mrb[0].mxu0
  %1059 = vmatprep.mubr.bf16.mxu0 %v305
  %1060 = vmatmul.mubr.bf16.gmra.mrb[0].mxu0 %v304
  %v1061 = vpop.f32.mrb[0].mxu0
  %v1062 = vadd.f32 %v830, %v1061
  %v1063 = vpop.f32.mrb[0].mxu0
  %v1064 = vpop.f32.mrb[0].mxu0
  %v1065 = vadd.f32 %v833, %v1064
  %v1066 = vpop.f32.mrb[0].mxu0
  %1067 = vmatprep.mubr.bf16.mxu0 %v310
  %1068 = vmatmul.mubr.bf16.gmra.mrb[0].mxu0 %v309
  %v1069 = vpop.f32.mrb[0].mxu0
  %v1070 = vadd.f32 %v838, %v1069
  %v1071 = vpop.f32.mrb[0].mxu0
  %v1072 = vpop.f32.mrb[0].mxu0
  %v1073 = vadd.f32 %v841, %v1072
  %v1074 = vpop.f32.mrb[0].mxu0
  %1075 = vmatprep.mubr.bf16.mxu0 %v315
  %1076 = vmatmul.mubr.bf16.gmra.mrb[0].mxu0 %v314
  %v1077 = vpop.f32.mrb[0].mxu0
  %v1078 = vadd.f32 %v846, %v1077
  %v1079 = vpop.f32.mrb[0].mxu0
  %v1080 = vpop.f32.mrb[0].mxu0
  %v1081 = vadd.f32 %v849, %v1080
  %v1082 = vpop.f32.mrb[0].mxu0
  %1083 = vmatprep.mubr.bf16.mxu0 %v320
  %1084 = vmatmul.mubr.bf16.gmra.mrb[0].mxu0 %v319
  %v1085 = vpop.f32.mrb[0].mxu0
  %v1086 = vadd.f32 %v854, %v1085
  %v1087 = vpop.f32.mrb[0].mxu0
  %v1088 = vpop.f32.mrb[0].mxu0
  %v1089 = vadd.f32 %v857, %v1088
  %v1090 = vpop.f32.mrb[0].mxu0
  %1091 = vmatprep.mubr.bf16.mxu0 %v325
  %1092 = vmatmul.mubr.bf16.gmra.mrb[0].mxu0 %v324
  %v1093 = vpop.f32.mrb[0].mxu0
  %v1094 = vadd.f32 %v862, %v1093
  %v1095 = vpop.f32.mrb[0].mxu0
  %v1096 = vpop.f32.mrb[0].mxu0
  %v1097 = vadd.f32 %v865, %v1096
  %v1098 = vpop.f32.mrb[0].mxu0
  %1099 = vmatprep.mubr.bf16.mxu0 %v330
  %1100 = vmatmul.mubr.bf16.gmra.mrb[0].mxu0 %v329
  %v1101 = vpop.f32.mrb[0].mxu0
  %v1102 = vadd.f32 %v870, %v1101
  %v1103 = vpop.f32.mrb[0].mxu0
  %v1104 = vpop.f32.mrb[0].mxu0
  %v1105 = vadd.f32 %v873, %v1104
  %v1106 = vpop.f32.mrb[0].mxu0
  %1107 = vmatprep.mubr.bf16.mxu0 %v335
  %1108 = vmatmul.mubr.bf16.gmra.mrb[0].mxu0 %v334
  %v1109 = vpop.f32.mrb[0].mxu0
  %v1110 = vadd.f32 %v878, %v1109
  %v1111 = vpop.f32.mrb[0].mxu0
  %v1112 = vpop.f32.mrb[0].mxu0
  %v1113 = vadd.f32 %v881, %v1112
  %v1114 = vpop.f32.mrb[0].mxu0
  %1115 = vmatprep.mubr.bf16.mxu0 %v340
  %1116 = vmatmul.mubr.bf16.gmra.mrb[0].mxu0 %v339
  %v1117 = vpop.f32.mrb[0].mxu0
  %v1118 = vadd.f32 %v886, %v1117
  %v1119 = vpop.f32.mrb[0].mxu0
  %v1120 = vpop.f32.mrb[0].mxu0
  %v1121 = vadd.f32 %v889, %v1120
  %v1122 = vpop.f32.mrb[0].mxu0
  %1123 = vmatprep.mubr.bf16.mxu0 %v345
  %1124 = vmatmul.mubr.bf16.gmra.mrb[0].mxu0 %v344
  %v1125 = vpop.f32.mrb[0].mxu0
  %v1126 = vadd.f32 %v894, %v1125
  %v1127 = vpop.f32.mrb[0].mxu0
  %v1128 = vpop.f32.mrb[0].mxu0
  %v1129 = vadd.f32 %v897, %v1128
  %v1130 = vpop.f32.mrb[0].mxu0
  %1131 = vmatprep.mubr.bf16.mxu0 %v350
  %1132 = vmatmul.mubr.bf16.gmra.mrb[0].mxu0 %v349
  %v1133 = vpop.f32.mrb[0].mxu0
  %v1134 = vadd.f32 %v902, %v1133
  %v1135 = vpop.f32.mrb[0].mxu0
  %v1136 = vpop.f32.mrb[0].mxu0
  %v1137 = vadd.f32 %v905, %v1136
  %v1138 = vpop.f32.mrb[0].mxu0
  %1139 = vmatprep.mubr.bf16.mxu0 %v355
  %1140 = vmatmul.mubr.bf16.gmra.mrb[0].mxu0 %v354
  %v1141 = vpop.f32.mrb[0].mxu0
  %v1142 = vadd.f32 %v910, %v1141
  %v1143 = vpop.f32.mrb[0].mxu0
  %v1144 = vpop.f32.mrb[0].mxu0
  %v1145 = vadd.f32 %v913, %v1144
  %v1146 = vpop.f32.mrb[0].mxu0
  %1147 = vmatprep.mubr.bf16.mxu0 %v360
  %1148 = vmatmul.mubr.bf16.gmra.mrb[0].mxu0 %v359
  %v1149 = vpop.f32.mrb[0].mxu0
  %v1150 = vadd.f32 %v918, %v1149
  %v1151 = vpop.f32.mrb[0].mxu0
  %v1152 = vpop.f32.mrb[0].mxu0
  %v1153 = vadd.f32 %v921, %v1152
  %v1154 = vpop.f32.mrb[0].mxu0
  %1155 = vmatprep.mubr.bf16.mxu0 %v365
  %1156 = vmatmul.mubr.bf16.gmra.mrb[0].mxu0 %v364
  %v1157 = vpop.f32.mrb[0].mxu0
  %v1158 = vadd.f32 %v926, %v1157
  %v1159 = vpop.f32.mrb[0].mxu0
  %v1160 = vpop.f32.mrb[0].mxu0
  %v1161 = vadd.f32 %v929, %v1160
  %v1162 = vpop.f32.mrb[0].mxu0
  %1163 = vmatprep.mubr.bf16.mxu0 %v370
  %1164 = vmatmul.mubr.bf16.gmra.mrb[0].mxu0 %v369
  %v1165 = vpop.f32.mrb[0].mxu0
  %v1166 = vadd.f32 %v934, %v1165
  %v1167 = vpop.f32.mrb[0].mxu0
  %v1168 = vpop.f32.mrb[0].mxu0
  %v1169 = vadd.f32 %v937, %v1168
  %v1170 = vpop.f32.mrb[0].mxu0
  %1171 = vmatprep.mubr.bf16.mxu0 %v375
  %1172 = vmatmul.mubr.bf16.gmra.mrb[0].mxu0 %v374
  %v1173 = vpop.f32.mrb[0].mxu0
  %v1174 = vadd.f32 %v942, %v1173
  %v1175 = vpop.f32.mrb[0].mxu0
  %v1176 = vpop.f32.mrb[0].mxu0
  %v1177 = vadd.f32 %v945, %v1176
  %v1178 = vpop.f32.mrb[0].mxu0
  %1179 = vmatprep.mubr.bf16.mxu0 %v380
  %1180 = vmatmul.mubr.bf16.gmra.mrb[0].mxu0 %v379
  %v1181 = vpop.f32.mrb[0].mxu0
  %v1182 = vadd.f32 %v950, %v1181
  %v1183 = vpop.f32.mrb[0].mxu0
  %v1184 = vpop.f32.mrb[0].mxu0
  %v1185 = vadd.f32 %v953, %v1184
  %v1186 = vpop.f32.mrb[0].mxu0
  %1187 = vmatprep.mubr.bf16.mxu0 %v385
  %1188 = vmatmul.mubr.bf16.gmra.mrb[0].mxu0 %v384
  %v1189 = vpop.f32.mrb[0].mxu0
  %v1190 = vadd.f32 %v958, %v1189
  %v1191 = vpop.f32.mrb[0].mxu0
  %v1192 = vpop.f32.mrb[0].mxu0
  %v1193 = vadd.f32 %v961, %v1192
  %v1194 = vpop.f32.mrb[0].mxu0
  %1195 = vmatprep.mubr.bf16.mxu0 %v390
  %1196 = vmatmul.mubr.bf16.gmra.mrb[0].mxu0 %v389
  %v1197 = vpop.f32.mrb[0].mxu0
  %v1198 = vadd.f32 %v966, %v1197
  %v1199 = vpop.f32.mrb[0].mxu0
  %v1200 = vpop.f32.mrb[0].mxu0
  %v1201 = vadd.f32 %v969, %v1200
  %v1202 = vpop.f32.mrb[0].mxu0
  %1203 = vmatprep.mubr.bf16.mxu0 %v395
  %1204 = vmatmul.mubr.bf16.gmra.mrb[0].mxu0 %v394
  %v1205 = vpop.f32.mrb[0].mxu0
  %v1206 = vadd.f32 %v974, %v1205
  %v1207 = vpop.f32.mrb[0].mxu0
  %v1208 = vpop.f32.mrb[0].mxu0
  %v1209 = vpop.f32.mrb[0].mxu0
  %1210 = vdwg.mxu0
  %1211 = vmatprep.subr.bf16.mxu0 0
  %1212 = vmatpush1.bf16.msra.mxu0 %v745
  %1213 = vmatprep.subr.bf16.mxu0 0
  %1214 = vmatpush1.bf16.msra.mxu0 0
  %1215 = vmatprep.subr.bf16.mxu0 0
  %1216 = vmatpush1.bf16.msra.mxu0 0
  %1217 = vmatprep.subr.bf16.mxu0 0
  %1218 = vmatpush1.bf16.msra.mxu0 0
  %1219 = vmatprep.subr.bf16.mxu0 0
  %1220 = vmatpush1.bf16.msra.mxu0 0
  %1221 = vmatprep.subr.bf16.mxu0 0
  %1222 = vmatpush1.bf16.msra.mxu0 0
  %1223 = vmatprep.subr.bf16.mxu0 0
  %1224 = vmatpush1.bf16.msra.mxu0 0
  %1225 = vmatprep.subr.bf16.mxu0 0
  %1226 = vmatpush1.bf16.msra.mxu0 0
  %1227 = vmatprep.subr.bf16.mxu0 0
  %1228 = vmatpush1.bf16.msra.mxu0 0
  %1229 = vmatprep.subr.bf16.mxu0 0
  %1230 = vmatpush1.bf16.msra.mxu0 0
  %1231 = vmatprep.subr.bf16.mxu0 0
  %1232 = vmatpush1.bf16.msra.mxu0 0
  %1233 = vmatprep.subr.bf16.mxu0 0
  %1234 = vmatpush1.bf16.msra.mxu0 0
  %1235 = vmatprep.subr.bf16.mxu0 0
  %1236 = vmatpush1.bf16.msra.mxu0 0
  %1237 = vmatprep.subr.bf16.mxu0 0
  %1238 = vmatpush1.bf16.msra.mxu0 0
  %1239 = vmatprep.subr.bf16.mxu0 0
  %1240 = vmatpush1.bf16.msra.mxu0 0
  %1241 = vmatprep.subr.bf16.mxu0 0
  %1242 = vmatpush1.bf16.msra.mxu0 0
  %1243 = vmatprep.mubr.bf16.mxu0 0
  %1244 = vmatmul.mubr.bf16.gmra.mrb[0].mxu0 %v666
  %v1245 = vpop.f32.mrb[0].mxu0
  %v1246 = vadd.f32 %v1014, %v1245
  %v1247 = vpop.f32.mrb[0].mxu0
  %v1248 = vpop.f32.mrb[0].mxu0
  %v1249 = vadd.f32 %v1017, %v1248
  %v1250 = vpop.f32.mrb[0].mxu0
  %1251 = vmatprep.mubr.bf16.mxu0 0
  %1252 = vmatmul.mubr.bf16.gmra.mrb[0].mxu0 %v669
  %v1253 = vpop.f32.mrb[0].mxu0
  %v1254 = vadd.f32 %v1022, %v1253
  %v1255 = vpop.f32.mrb[0].mxu0
  %v1256 = vpop.f32.mrb[0].mxu0
  %v1257 = vadd.f32 %v1025, %v1256
  %v1258 = vpop.f32.mrb[0].mxu0
  %1259 = vmatprep.mubr.bf16.mxu0 0
  %1260 = vmatmul.mubr.bf16.gmra.mrb[0].mxu0 %v672
  %v1261 = vpop.f32.mrb[0].mxu0
  %v1262 = vadd.f32 %v1030, %v1261
  %v1263 = vpop.f32.mrb[0].mxu0
  %v1264 = vpop.f32.mrb[0].mxu0
  %v1265 = vadd.f32 %v1033, %v1264
  %v1266 = vpop.f32.mrb[0].mxu0
  %1267 = vmatprep.mubr.bf16.mxu0 0
  %1268 = vmatmul.mubr.bf16.gmra.mrb[0].mxu0 %v675
  %v1269 = vpop.f32.mrb[0].mxu0
  %v1270 = vadd.f32 %v1038, %v1269
  %v1271 = vpop.f32.mrb[0].mxu0
  %v1272 = vpop.f32.mrb[0].mxu0
  %v1273 = vadd.f32 %v1041, %v1272
  %v1274 = vpop.f32.mrb[0].mxu0
  %1275 = vmatprep.mubr.bf16.mxu0 0
  %1276 = vmatmul.mubr.bf16.gmra.mrb[0].mxu0 %v678
  %v1277 = vpop.f32.mrb[0].mxu0
  %v1278 = vadd.f32 %v1046, %v1277
  %v1279 = vpop.f32.mrb[0].mxu0
  %v1280 = vpop.f32.mrb[0].mxu0
  %v1281 = vadd.f32 %v1049, %v1280
  %v1282 = vpop.f32.mrb[0].mxu0
  %1283 = vmatprep.mubr.bf16.mxu0 0
  %1284 = vmatmul.mubr.bf16.gmra.mrb[0].mxu0 %v681
  %v1285 = vpop.f32.mrb[0].mxu0
  %v1286 = vadd.f32 %v1054, %v1285
  %v1287 = vpop.f32.mrb[0].mxu0
  %v1288 = vpop.f32.mrb[0].mxu0
  %v1289 = vadd.f32 %v1057, %v1288
  %v1290 = vpop.f32.mrb[0].mxu0
  %1291 = vmatprep.mubr.bf16.mxu0 0
  %1292 = vmatmul.mubr.bf16.gmra.mrb[0].mxu0 %v684
  %v1293 = vpop.f32.mrb[0].mxu0
  %v1294 = vadd.f32 %v1062, %v1293
  %v1295 = vpop.f32.mrb[0].mxu0
  %v1296 = vpop.f32.mrb[0].mxu0
  %v1297 = vadd.f32 %v1065, %v1296
  %v1298 = vpop.f32.mrb[0].mxu0
  %1299 = vmatprep.mubr.bf16.mxu0 0
  %1300 = vmatmul.mubr.bf16.gmra.mrb[0].mxu0 %v687
  %v1301 = vpop.f32.mrb[0].mxu0
  %v1302 = vadd.f32 %v1070, %v1301
  %v1303 = vpop.f32.mrb[0].mxu0
  %v1304 = vpop.f32.mrb[0].mxu0
  %v1305 = vadd.f32 %v1073, %v1304
  %v1306 = vpop.f32.mrb[0].mxu0
  %1307 = vmatprep.mubr.bf16.mxu0 0
  %1308 = vmatmul.mubr.bf16.gmra.mrb[0].mxu0 %v690
  %v1309 = vpop.f32.mrb[0].mxu0
  %v1310 = vadd.f32 %v1078, %v1309
  %v1311 = vpop.f32.mrb[0].mxu0
  %v1312 = vpop.f32.mrb[0].mxu0
  %v1313 = vadd.f32 %v1081, %v1312
  %v1314 = vpop.f32.mrb[0].mxu0
  %1315 = vmatprep.mubr.bf16.mxu0 0
  %1316 = vmatmul.mubr.bf16.gmra.mrb[0].mxu0 %v693
  %v1317 = vpop.f32.mrb[0].mxu0
  %v1318 = vadd.f32 %v1086, %v1317
  %v1319 = vpop.f32.mrb[0].mxu0
  %v1320 = vpop.f32.mrb[0].mxu0
  %v1321 = vadd.f32 %v1089, %v1320
  %v1322 = vpop.f32.mrb[0].mxu0
  %1323 = vmatprep.mubr.bf16.mxu0 0
  %1324 = vmatmul.mubr.bf16.gmra.mrb[0].mxu0 %v696
  %v1325 = vpop.f32.mrb[0].mxu0
  %v1326 = vadd.f32 %v1094, %v1325
  %v1327 = vpop.f32.mrb[0].mxu0
  %v1328 = vpop.f32.mrb[0].mxu0
  %v1329 = vadd.f32 %v1097, %v1328
  %v1330 = vpop.f32.mrb[0].mxu0
  %1331 = vmatprep.mubr.bf16.mxu0 0
  %1332 = vmatmul.mubr.bf16.gmra.mrb[0].mxu0 %v699
  %v1333 = vpop.f32.mrb[0].mxu0
  %v1334 = vadd.f32 %v1102, %v1333
  %v1335 = vpop.f32.mrb[0].mxu0
  %v1336 = vpop.f32.mrb[0].mxu0
  %v1337 = vadd.f32 %v1105, %v1336
  %v1338 = vpop.f32.mrb[0].mxu0
  %1339 = vmatprep.mubr.bf16.mxu0 0
  %1340 = vmatmul.mubr.bf16.gmra.mrb[0].mxu0 %v702
  %v1341 = vpop.f32.mrb[0].mxu0
  %v1342 = vadd.f32 %v1110, %v1341
  %v1343 = vpop.f32.mrb[0].mxu0
  %v1344 = vpop.f32.mrb[0].mxu0
  %v1345 = vadd.f32 %v1113, %v1344
  %v1346 = vpop.f32.mrb[0].mxu0
  %1347 = vmatprep.mubr.bf16.mxu0 0
  %1348 = vmatmul.mubr.bf16.gmra.mrb[0].mxu0 %v705
  %v1349 = vpop.f32.mrb[0].mxu0
  %v1350 = vadd.f32 %v1118, %v1349
  %v1351 = vpop.f32.mrb[0].mxu0
  %v1352 = vpop.f32.mrb[0].mxu0
  %v1353 = vadd.f32 %v1121, %v1352
  %v1354 = vpop.f32.mrb[0].mxu0
  %1355 = vmatprep.mubr.bf16.mxu0 0
  %1356 = vmatmul.mubr.bf16.gmra.mrb[0].mxu0 %v708
  %v1357 = vpop.f32.mrb[0].mxu0
  %v1358 = vadd.f32 %v1126, %v1357
  %v1359 = vpop.f32.mrb[0].mxu0
  %v1360 = vpop.f32.mrb[0].mxu0
  %v1361 = vadd.f32 %v1129, %v1360
  %v1362 = vpop.f32.mrb[0].mxu0
  %1363 = vmatprep.mubr.bf16.mxu0 0
  %1364 = vmatmul.mubr.bf16.gmra.mrb[0].mxu0 %v711
  %v1365 = vpop.f32.mrb[0].mxu0
  %v1366 = vadd.f32 %v1134, %v1365
  %v1367 = vpop.f32.mrb[0].mxu0
  %v1368 = vpop.f32.mrb[0].mxu0
  %v1369 = vadd.f32 %v1137, %v1368
  %v1370 = vpop.f32.mrb[0].mxu0
  %1371 = vmatprep.mubr.bf16.mxu0 0
  %1372 = vmatmul.mubr.bf16.gmra.mrb[0].mxu0 %v714
  %v1373 = vpop.f32.mrb[0].mxu0
  %v1374 = vadd.f32 %v1142, %v1373
  %v1375 = vpop.f32.mrb[0].mxu0
  %v1376 = vpop.f32.mrb[0].mxu0
  %v1377 = vadd.f32 %v1145, %v1376
  %v1378 = vpop.f32.mrb[0].mxu0
  %1379 = vmatprep.mubr.bf16.mxu0 0
  %1380 = vmatmul.mubr.bf16.gmra.mrb[0].mxu0 %v717
  %v1381 = vpop.f32.mrb[0].mxu0
  %v1382 = vadd.f32 %v1150, %v1381
  %v1383 = vpop.f32.mrb[0].mxu0
  %v1384 = vpop.f32.mrb[0].mxu0
  %v1385 = vadd.f32 %v1153, %v1384
  %v1386 = vpop.f32.mrb[0].mxu0
  %1387 = vmatprep.mubr.bf16.mxu0 0
  %1388 = vmatmul.mubr.bf16.gmra.mrb[0].mxu0 %v720
  %v1389 = vpop.f32.mrb[0].mxu0
  %v1390 = vadd.f32 %v1158, %v1389
  %v1391 = vpop.f32.mrb[0].mxu0
  %v1392 = vpop.f32.mrb[0].mxu0
  %v1393 = vadd.f32 %v1161, %v1392
  %v1394 = vpop.f32.mrb[0].mxu0
  %1395 = vmatprep.mubr.bf16.mxu0 0
  %1396 = vmatmul.mubr.bf16.gmra.mrb[0].mxu0 %v723
  %v1397 = vpop.f32.mrb[0].mxu0
  %v1398 = vadd.f32 %v1166, %v1397
  %v1399 = vpop.f32.mrb[0].mxu0
  %v1400 = vpop.f32.mrb[0].mxu0
  %v1401 = vadd.f32 %v1169, %v1400
  %v1402 = vpop.f32.mrb[0].mxu0
  %1403 = vmatprep.mubr.bf16.mxu0 0
  %1404 = vmatmul.mubr.bf16.gmra.mrb[0].mxu0 %v726
  %v1405 = vpop.f32.mrb[0].mxu0
  %v1406 = vadd.f32 %v1174, %v1405
  %v1407 = vpop.f32.mrb[0].mxu0
  %v1408 = vpop.f32.mrb[0].mxu0
  %v1409 = vadd.f32 %v1177, %v1408
  %v1410 = vpop.f32.mrb[0].mxu0
  %1411 = vmatprep.mubr.bf16.mxu0 0
  %1412 = vmatmul.mubr.bf16.gmra.mrb[0].mxu0 %v729
  %v1413 = vpop.f32.mrb[0].mxu0
  %v1414 = vadd.f32 %v1182, %v1413
  %v1415 = vpop.f32.mrb[0].mxu0
  %v1416 = vpop.f32.mrb[0].mxu0
  %v1417 = vadd.f32 %v1185, %v1416
  %v1418 = vpop.f32.mrb[0].mxu0
  %1419 = vmatprep.mubr.bf16.mxu0 0
  %1420 = vmatmul.mubr.bf16.gmra.mrb[0].mxu0 %v732
  %v1421 = vpop.f32.mrb[0].mxu0
  %v1422 = vadd.f32 %v1190, %v1421
  %v1423 = vpop.f32.mrb[0].mxu0
  %v1424 = vpop.f32.mrb[0].mxu0
  %v1425 = vadd.f32 %v1193, %v1424
  %v1426 = vpop.f32.mrb[0].mxu0
  %1427 = vmatprep.mubr.bf16.mxu0 0
  %1428 = vmatmul.mubr.bf16.gmra.mrb[0].mxu0 %v735
  %v1429 = vpop.f32.mrb[0].mxu0
  %v1430 = vadd.f32 %v1198, %v1429
  %v1431 = vpop.f32.mrb[0].mxu0
  %v1432 = vpop.f32.mrb[0].mxu0
  %v1433 = vadd.f32 %v1201, %v1432
  %v1434 = vpop.f32.mrb[0].mxu0
  %1435 = vmatprep.mubr.bf16.mxu0 0
  %1436 = vmatmul.mubr.bf16.gmra.mrb[0].mxu0 %v738
  %v1437 = vpop.f32.mrb[0].mxu0
  %v1438 = vadd.f32 %v1206, %v1437
  %v1439 = vpop.f32.mrb[0].mxu0
  %v1440 = vpop.f32.mrb[0].mxu0
  %v1441 = vpop.f32.mrb[0].mxu0
  %1442 = vdwg.mxu0
  %v1443 = vmax.f32 %v1246, 0.0
  %v1444 = vmax.f32 %v1249, 0.0
  %v1445 = vmax.f32 %v1254, 0.0
  %v1446 = vmax.f32 %v1257, 0.0
  %v1447 = vmax.f32 %v1262, 0.0
  %v1448 = vmax.f32 %v1265, 0.0
  %v1449 = vmax.f32 %v1270, 0.0
  %v1450 = vmax.f32 %v1273, 0.0
  %v1451 = vmax.f32 %v1278, 0.0
  %v1452 = vmax.f32 %v1281, 0.0
  %v1453 = vmax.f32 %v1286, 0.0
  %v1454 = vmax.f32 %v1289, 0.0
  %v1455 = vmax.f32 %v1294, 0.0
  %v1456 = vmax.f32 %v1297, 0.0
  %v1457 = vmax.f32 %v1302, 0.0
  %v1458 = vmax.f32 %v1305, 0.0
  %v1459 = vmax.f32 %v1310, 0.0
  %v1460 = vmax.f32 %v1313, 0.0
  %v1461 = vmax.f32 %v1318, 0.0
  %v1462 = vmax.f32 %v1321, 0.0
  %v1463 = vmax.f32 %v1326, 0.0
  %v1464 = vmax.f32 %v1329, 0.0
  %v1465 = vmax.f32 %v1334, 0.0
  %v1466 = vmax.f32 %v1337, 0.0
  %v1467 = vmax.f32 %v1342, 0.0
  %v1468 = vmax.f32 %v1345, 0.0
  %v1469 = vmax.f32 %v1350, 0.0
  %v1470 = vmax.f32 %v1353, 0.0
  %v1471 = vmax.f32 %v1358, 0.0
  %v1472 = vmax.f32 %v1361, 0.0
  %v1473 = vmax.f32 %v1366, 0.0
  %v1474 = vmax.f32 %v1369, 0.0
  %v1475 = vmax.f32 %v1374, 0.0
  %v1476 = vmax.f32 %v1377, 0.0
  %v1477 = vmax.f32 %v1382, 0.0
  %v1478 = vmax.f32 %v1385, 0.0
  %v1479 = vmax.f32 %v1390, 0.0
  %v1480 = vmax.f32 %v1393, 0.0
  %v1481 = vmax.f32 %v1398, 0.0
  %v1482 = vmax.f32 %v1401, 0.0
  %v1483 = vmax.f32 %v1406, 0.0
  %v1484 = vmax.f32 %v1409, 0.0
  %v1485 = vmax.f32 %v1414, 0.0
  %v1486 = vmax.f32 %v1417, 0.0
  %v1487 = vmax.f32 %v1422, 0.0
  %v1488 = vmax.f32 %v1425, 0.0
  %v1489 = vmax.f32 %v1430, 0.0
  %v1490 = vmax.f32 %v1433, 0.0
  %v1491 = vmax.f32 %v1438, 0.0
  %v1492 = vpack.c.bf16 %v1444, %v1443
  %v1493 = vpack.c.bf16 %v1446, %v1445
  %v1494 = vpack.c.bf16 %v1448, %v1447
  %v1495 = vpack.c.bf16 %v1450, %v1449
  %v1496 = vpack.c.bf16 %v1452, %v1451
  %v1497 = vpack.c.bf16 %v1454, %v1453
  %v1498 = vpack.c.bf16 %v1456, %v1455
  %v1499 = vpack.c.bf16 %v1458, %v1457
  %v1500 = vpack.c.bf16 %v1460, %v1459
  %v1501 = vpack.c.bf16 %v1462, %v1461
  %v1502 = vpack.c.bf16 %v1464, %v1463
  %v1503 = vpack.c.bf16 %v1466, %v1465
  %v1504 = vpack.c.bf16 %v1468, %v1467
  %v1505 = vpack.c.bf16 %v1470, %v1469
  %v1506 = vpack.c.bf16 %v1472, %v1471
  %v1507 = vpack.c.bf16 %v1474, %v1473
  %v1508 = vpack.c.bf16 %v1476, %v1475
  %v1509 = vpack.c.bf16 %v1478, %v1477
  %v1510 = vpack.c.bf16 %v1480, %v1479
  %v1511 = vpack.c.bf16 %v1482, %v1481
  %v1512 = vpack.c.bf16 %v1484, %v1483
  %v1513 = vpack.c.bf16 %v1486, %v1485
  %v1514 = vpack.c.bf16 %v1488, %v1487
  %v1515 = vpack.c.bf16 %v1490, %v1489
  %v1516 = vpack.c.bf16 %v1491, %v1491
  %v1517 = vld [vmem:[%s3] sm:$0xf]
  %v1518 = vld [vmem:[%s3 + $0x4] sm:$0xf]
  %v1519 = vld [vmem:[%s3 + $0x8] sm:$0xf]
  %v1520 = vld [vmem:[%s3 + $0xc] sm:$0xf]
  %v1521 = vld [vmem:[%s3 + $0x10] sm:$0xf]
  %v1522 = vld [vmem:[%s3 + $0x14] sm:$0xf]
  %v1523 = vld [vmem:[%s3 + $0x18] sm:$0xf]
  %v1524 = vld [vmem:[%s3 + $0x1c] sm:$0xf]
  %v1525 = vld [vmem:[%s3 + $0x20] sm:$0xf]
  %v1526 = vld [vmem:[%s3 + $0x24] sm:$0xf]
  %v1527 = vld [vmem:[%s3 + $0x28] sm:$0xf]
  %v1528 = vld [vmem:[%s3 + $0x2c] sm:$0xf]
  %v1529 = vld [vmem:[%s3 + $0x30] sm:$0xf]
  %v1530 = vld [vmem:[%s3 + $0x34] sm:$0xf]
  %v1531 = vld [vmem:[%s3 + $0x38] sm:$0xf]
  %v1532 = vld [vmem:[%s3 + $0x3c] sm:$0xf]
  %v1533 = vld [vmem:[%s4] sm:$0x1]
  %v1535 = vlaneseq
  %v1536 = vshrl.u32 %v1535, 7
  %v1537 = vsub.s32 0, %v1536
  %v1538 = vrot.slane %v1533, %v1537
  %v1556 = vunpack.c.l.b16 %v1517
  %v1557 = vunpack.c.l.b16 %v1518
  %v1558 = vunpack.c.l.b16 %v1519
  %v1559 = vunpack.c.l.b16 %v1520
  %v1560 = vunpack.c.l.b16 %v1521
  %v1561 = vunpack.c.l.b16 %v1522
  %v1562 = vunpack.c.l.b16 %v1523
  %v1563 = vunpack.c.l.b16 %v1524
  %v1564 = vunpack.c.l.b16 %v1525
  %v1565 = vunpack.c.l.b16 %v1526
  %v1566 = vunpack.c.l.b16 %v1527
  %v1567 = vunpack.c.l.b16 %v1528
  %v1568 = vunpack.c.l.b16 %v1529
  %v1569 = vunpack.c.l.b16 %v1530
  %v1570 = vunpack.c.l.b16 %v1531
  %v1571 = vunpack.c.l.b16 %v1532
  %v1572 = vpack.c.b16 %v1557, %v1556
  %v1573 = vpack.c.b16 %v1559, %v1558
  %v1574 = vpack.c.b16 %v1561, %v1560
  %v1575 = vpack.c.b16 %v1563, %v1562
  %v1576 = vpack.c.b16 %v1565, %v1564
  %v1577 = vpack.c.b16 %v1567, %v1566
  %v1578 = vpack.c.b16 %v1569, %v1568
  %v1579 = vpack.c.b16 %v1571, %v1570
  %1588 = vmatprep.subr.bf16.mxu0 0
  %1589 = vmatpush1.bf16.msra.mxu0 %v1572
  %1590 = vmatprep.subr.bf16.mxu0 0
  %1591 = vmatpush1.bf16.msra.mxu0 %v1573
  %1592 = vmatprep.subr.bf16.mxu0 0
  %1593 = vmatpush1.bf16.msra.mxu0 %v1574
  %1594 = vmatprep.subr.bf16.mxu0 0
  %1595 = vmatpush1.bf16.msra.mxu0 %v1575
  %1596 = vmatprep.subr.bf16.mxu0 0
  %1597 = vmatpush1.bf16.msra.mxu0 %v1576
  %1598 = vmatprep.subr.bf16.mxu0 0
  %1599 = vmatpush1.bf16.msra.mxu0 %v1577
  %1600 = vmatprep.subr.bf16.mxu0 0
  %1601 = vmatpush1.bf16.msra.mxu0 %v1578
  %1602 = vmatprep.subr.bf16.mxu0 0
  %1603 = vmatpush1.bf16.msra.mxu0 %v1579
  %1604 = vmatprep.subr.bf16.mxu0 0
  %1605 = vmatpush1.bf16.msra.mxu0 0
  %1606 = vmatprep.subr.bf16.mxu0 0
  %1607 = vmatpush1.bf16.msra.mxu0 0
  %1608 = vmatprep.subr.bf16.mxu0 0
  %1609 = vmatpush1.bf16.msra.mxu0 0
  %1610 = vmatprep.subr.bf16.mxu0 0
  %1611 = vmatpush1.bf16.msra.mxu0 0
  %1612 = vmatprep.subr.bf16.mxu0 0
  %1613 = vmatpush1.bf16.msra.mxu0 0
  %1614 = vmatprep.subr.bf16.mxu0 0
  %1615 = vmatpush1.bf16.msra.mxu0 0
  %1616 = vmatprep.subr.bf16.mxu0 0
  %1617 = vmatpush1.bf16.msra.mxu0 0
  %1618 = vmatprep.subr.bf16.mxu0 0
  %1619 = vmatpush1.bf16.msra.mxu0 0
  %1620 = vmatprep.mubr.bf16.mxu0 0
  %1621 = vmatmul.mubr.bf16.gmra.mrb[0].mxu0 %v1492
  %v1622 = vpop.f32.mrb[0].mxu0
  %v1623 = vadd.f32 %v1538, %v1622
  %v1624 = vpop.f32.mrb[0].mxu0
  %v1625 = vpop.f32.mrb[0].mxu0
  %v1626 = vadd.f32 %v1538, %v1625
  %v1627 = vpop.f32.mrb[0].mxu0
  %1628 = vmatprep.mubr.bf16.mxu0 0
  %1629 = vmatmul.mubr.bf16.gmra.mrb[0].mxu0 %v1493
  %v1630 = vpop.f32.mrb[0].mxu0
  %v1631 = vadd.f32 %v1538, %v1630
  %v1632 = vpop.f32.mrb[0].mxu0
  %v1633 = vpop.f32.mrb[0].mxu0
  %v1634 = vadd.f32 %v1538, %v1633
  %v1635 = vpop.f32.mrb[0].mxu0
  %1636 = vmatprep.mubr.bf16.mxu0 0
  %1637 = vmatmul.mubr.bf16.gmra.mrb[0].mxu0 %v1494
  %v1638 = vpop.f32.mrb[0].mxu0
  %v1639 = vadd.f32 %v1538, %v1638
  %v1640 = vpop.f32.mrb[0].mxu0
  %v1641 = vpop.f32.mrb[0].mxu0
  %v1642 = vadd.f32 %v1538, %v1641
  %v1643 = vpop.f32.mrb[0].mxu0
  %1644 = vmatprep.mubr.bf16.mxu0 0
  %1645 = vmatmul.mubr.bf16.gmra.mrb[0].mxu0 %v1495
  %v1646 = vpop.f32.mrb[0].mxu0
  %v1647 = vadd.f32 %v1538, %v1646
  %v1648 = vpop.f32.mrb[0].mxu0
  %v1649 = vpop.f32.mrb[0].mxu0
  %v1650 = vadd.f32 %v1538, %v1649
  %v1651 = vpop.f32.mrb[0].mxu0
  %1652 = vmatprep.mubr.bf16.mxu0 0
  %1653 = vmatmul.mubr.bf16.gmra.mrb[0].mxu0 %v1496
  %v1654 = vpop.f32.mrb[0].mxu0
  %v1655 = vadd.f32 %v1538, %v1654
  %v1656 = vpop.f32.mrb[0].mxu0
  %v1657 = vpop.f32.mrb[0].mxu0
  %v1658 = vadd.f32 %v1538, %v1657
  %v1659 = vpop.f32.mrb[0].mxu0
  %1660 = vmatprep.mubr.bf16.mxu0 0
  %1661 = vmatmul.mubr.bf16.gmra.mrb[0].mxu0 %v1497
  %v1662 = vpop.f32.mrb[0].mxu0
  %v1663 = vadd.f32 %v1538, %v1662
  %v1664 = vpop.f32.mrb[0].mxu0
  %v1665 = vpop.f32.mrb[0].mxu0
  %v1666 = vadd.f32 %v1538, %v1665
  %v1667 = vpop.f32.mrb[0].mxu0
  %1668 = vmatprep.mubr.bf16.mxu0 0
  %1669 = vmatmul.mubr.bf16.gmra.mrb[0].mxu0 %v1498
  %v1670 = vpop.f32.mrb[0].mxu0
  %v1671 = vadd.f32 %v1538, %v1670
  %v1672 = vpop.f32.mrb[0].mxu0
  %v1673 = vpop.f32.mrb[0].mxu0
  %v1674 = vadd.f32 %v1538, %v1673
  %v1675 = vpop.f32.mrb[0].mxu0
  %1676 = vmatprep.mubr.bf16.mxu0 0
  %1677 = vmatmul.mubr.bf16.gmra.mrb[0].mxu0 %v1499
  %v1678 = vpop.f32.mrb[0].mxu0
  %v1679 = vadd.f32 %v1538, %v1678
  %v1680 = vpop.f32.mrb[0].mxu0
  %v1681 = vpop.f32.mrb[0].mxu0
  %v1682 = vadd.f32 %v1538, %v1681
  %v1683 = vpop.f32.mrb[0].mxu0
  %1684 = vmatprep.mubr.bf16.mxu0 0
  %1685 = vmatmul.mubr.bf16.gmra.mrb[0].mxu0 %v1500
  %v1686 = vpop.f32.mrb[0].mxu0
  %v1687 = vadd.f32 %v1538, %v1686
  %v1688 = vpop.f32.mrb[0].mxu0
  %v1689 = vpop.f32.mrb[0].mxu0
  %v1690 = vadd.f32 %v1538, %v1689
  %v1691 = vpop.f32.mrb[0].mxu0
  %1692 = vmatprep.mubr.bf16.mxu0 0
  %1693 = vmatmul.mubr.bf16.gmra.mrb[0].mxu0 %v1501
  %v1694 = vpop.f32.mrb[0].mxu0
  %v1695 = vadd.f32 %v1538, %v1694
  %v1696 = vpop.f32.mrb[0].mxu0
  %v1697 = vpop.f32.mrb[0].mxu0
  %v1698 = vadd.f32 %v1538, %v1697
  %v1699 = vpop.f32.mrb[0].mxu0
  %1700 = vmatprep.mubr.bf16.mxu0 0
  %1701 = vmatmul.mubr.bf16.gmra.mrb[0].mxu0 %v1502
  %v1702 = vpop.f32.mrb[0].mxu0
  %v1703 = vadd.f32 %v1538, %v1702
  %v1704 = vpop.f32.mrb[0].mxu0
  %v1705 = vpop.f32.mrb[0].mxu0
  %v1706 = vadd.f32 %v1538, %v1705
  %v1707 = vpop.f32.mrb[0].mxu0
  %1708 = vmatprep.mubr.bf16.mxu0 0
  %1709 = vmatmul.mubr.bf16.gmra.mrb[0].mxu0 %v1503
  %v1710 = vpop.f32.mrb[0].mxu0
  %v1711 = vadd.f32 %v1538, %v1710
  %v1712 = vpop.f32.mrb[0].mxu0
  %v1713 = vpop.f32.mrb[0].mxu0
  %v1714 = vadd.f32 %v1538, %v1713
  %v1715 = vpop.f32.mrb[0].mxu0
  %1716 = vmatprep.mubr.bf16.mxu0 0
  %1717 = vmatmul.mubr.bf16.gmra.mrb[0].mxu0 %v1504
  %v1718 = vpop.f32.mrb[0].mxu0
  %v1719 = vadd.f32 %v1538, %v1718
  %v1720 = vpop.f32.mrb[0].mxu0
  %v1721 = vpop.f32.mrb[0].mxu0
  %v1722 = vadd.f32 %v1538, %v1721
  %v1723 = vpop.f32.mrb[0].mxu0
  %1724 = vmatprep.mubr.bf16.mxu0 0
  %1725 = vmatmul.mubr.bf16.gmra.mrb[0].mxu0 %v1505
  %v1726 = vpop.f32.mrb[0].mxu0
  %v1727 = vadd.f32 %v1538, %v1726
  %v1728 = vpop.f32.mrb[0].mxu0
  %v1729 = vpop.f32.mrb[0].mxu0
  %v1730 = vadd.f32 %v1538, %v1729
  %v1731 = vpop.f32.mrb[0].mxu0
  %1732 = vmatprep.mubr.bf16.mxu0 0
  %1733 = vmatmul.mubr.bf16.gmra.mrb[0].mxu0 %v1506
  %v1734 = vpop.f32.mrb[0].mxu0
  %v1735 = vadd.f32 %v1538, %v1734
  %v1736 = vpop.f32.mrb[0].mxu0
  %v1737 = vpop.f32.mrb[0].mxu0
  %v1738 = vadd.f32 %v1538, %v1737
  %v1739 = vpop.f32.mrb[0].mxu0
  %1740 = vmatprep.mubr.bf16.mxu0 0
  %1741 = vmatmul.mubr.bf16.gmra.mrb[0].mxu0 %v1507
  %v1742 = vpop.f32.mrb[0].mxu0
  %v1743 = vadd.f32 %v1538, %v1742
  %v1744 = vpop.f32.mrb[0].mxu0
  %v1745 = vpop.f32.mrb[0].mxu0
  %v1746 = vadd.f32 %v1538, %v1745
  %v1747 = vpop.f32.mrb[0].mxu0
  %1748 = vmatprep.mubr.bf16.mxu0 0
  %1749 = vmatmul.mubr.bf16.gmra.mrb[0].mxu0 %v1508
  %v1750 = vpop.f32.mrb[0].mxu0
  %v1751 = vadd.f32 %v1538, %v1750
  %v1752 = vpop.f32.mrb[0].mxu0
  %v1753 = vpop.f32.mrb[0].mxu0
  %v1754 = vadd.f32 %v1538, %v1753
  %v1755 = vpop.f32.mrb[0].mxu0
  %1756 = vmatprep.mubr.bf16.mxu0 0
  %1757 = vmatmul.mubr.bf16.gmra.mrb[0].mxu0 %v1509
  %v1758 = vpop.f32.mrb[0].mxu0
  %v1759 = vadd.f32 %v1538, %v1758
  %v1760 = vpop.f32.mrb[0].mxu0
  %v1761 = vpop.f32.mrb[0].mxu0
  %v1762 = vadd.f32 %v1538, %v1761
  %v1763 = vpop.f32.mrb[0].mxu0
  %1764 = vmatprep.mubr.bf16.mxu0 0
  %1765 = vmatmul.mubr.bf16.gmra.mrb[0].mxu0 %v1510
  %v1766 = vpop.f32.mrb[0].mxu0
  %v1767 = vadd.f32 %v1538, %v1766
  %v1768 = vpop.f32.mrb[0].mxu0
  %v1769 = vpop.f32.mrb[0].mxu0
  %v1770 = vadd.f32 %v1538, %v1769
  %v1771 = vpop.f32.mrb[0].mxu0
  %1772 = vmatprep.mubr.bf16.mxu0 0
  %1773 = vmatmul.mubr.bf16.gmra.mrb[0].mxu0 %v1511
  %v1774 = vpop.f32.mrb[0].mxu0
  %v1775 = vadd.f32 %v1538, %v1774
  %v1776 = vpop.f32.mrb[0].mxu0
  %v1777 = vpop.f32.mrb[0].mxu0
  %v1778 = vadd.f32 %v1538, %v1777
  %v1779 = vpop.f32.mrb[0].mxu0
  %1780 = vmatprep.mubr.bf16.mxu0 0
  %1781 = vmatmul.mubr.bf16.gmra.mrb[0].mxu0 %v1512
  %v1782 = vpop.f32.mrb[0].mxu0
  %v1783 = vadd.f32 %v1538, %v1782
  %v1784 = vpop.f32.mrb[0].mxu0
  %v1785 = vpop.f32.mrb[0].mxu0
  %v1786 = vadd.f32 %v1538, %v1785
  %v1787 = vpop.f32.mrb[0].mxu0
  %1788 = vmatprep.mubr.bf16.mxu0 0
  %1789 = vmatmul.mubr.bf16.gmra.mrb[0].mxu0 %v1513
  %v1790 = vpop.f32.mrb[0].mxu0
  %v1791 = vadd.f32 %v1538, %v1790
  %v1792 = vpop.f32.mrb[0].mxu0
  %v1793 = vpop.f32.mrb[0].mxu0
  %v1794 = vadd.f32 %v1538, %v1793
  %v1795 = vpop.f32.mrb[0].mxu0
  %1796 = vmatprep.mubr.bf16.mxu0 0
  %1797 = vmatmul.mubr.bf16.gmra.mrb[0].mxu0 %v1514
  %v1798 = vpop.f32.mrb[0].mxu0
  %v1799 = vadd.f32 %v1538, %v1798
  %v1800 = vpop.f32.mrb[0].mxu0
  %v1801 = vpop.f32.mrb[0].mxu0
  %v1802 = vadd.f32 %v1538, %v1801
  %v1803 = vpop.f32.mrb[0].mxu0
  %1804 = vmatprep.mubr.bf16.mxu0 0
  %1805 = vmatmul.mubr.bf16.gmra.mrb[0].mxu0 %v1515
  %v1806 = vpop.f32.mrb[0].mxu0
  %v1807 = vadd.f32 %v1538, %v1806
  %v1808 = vpop.f32.mrb[0].mxu0
  %v1809 = vpop.f32.mrb[0].mxu0
  %v1810 = vadd.f32 %v1538, %v1809
  %v1811 = vpop.f32.mrb[0].mxu0
  %1812 = vmatprep.mubr.bf16.mxu0 0
  %1813 = vmatmul.mubr.bf16.gmra.mrb[0].mxu0 %v1516
  %v1814 = vpop.f32.mrb[0].mxu0
  %v1815 = vadd.f32 %v1538, %v1814
  %v1816 = vpop.f32.mrb[0].mxu0
  %v1817 = vpop.f32.mrb[0].mxu0
  %v1818 = vpop.f32.mrb[0].mxu0
  %1819 = vdwg.mxu0
  %v1820 = vmax.f32 %v1623, 0.0
  %v1821 = vmax.f32 %v1626, 0.0
  %v1822 = vmax.f32 %v1631, 0.0
  %v1823 = vmax.f32 %v1634, 0.0
  %v1824 = vmax.f32 %v1639, 0.0
  %v1825 = vmax.f32 %v1642, 0.0
  %v1826 = vmax.f32 %v1647, 0.0
  %v1827 = vmax.f32 %v1650, 0.0
  %v1828 = vmax.f32 %v1655, 0.0
  %v1829 = vmax.f32 %v1658, 0.0
  %v1830 = vmax.f32 %v1663, 0.0
  %v1831 = vmax.f32 %v1666, 0.0
  %v1832 = vmax.f32 %v1671, 0.0
  %v1833 = vmax.f32 %v1674, 0.0
  %v1834 = vmax.f32 %v1679, 0.0
  %v1835 = vmax.f32 %v1682, 0.0
  %v1836 = vmax.f32 %v1687, 0.0
  %v1837 = vmax.f32 %v1690, 0.0
  %v1838 = vmax.f32 %v1695, 0.0
  %v1839 = vmax.f32 %v1698, 0.0
  %v1840 = vmax.f32 %v1703, 0.0
  %v1841 = vmax.f32 %v1706, 0.0
  %v1842 = vmax.f32 %v1711, 0.0
  %v1843 = vmax.f32 %v1714, 0.0
  %v1844 = vmax.f32 %v1719, 0.0
  %v1845 = vmax.f32 %v1722, 0.0
  %v1846 = vmax.f32 %v1727, 0.0
  %v1847 = vmax.f32 %v1730, 0.0
  %v1848 = vmax.f32 %v1735, 0.0
  %v1849 = vmax.f32 %v1738, 0.0
  %v1850 = vmax.f32 %v1743, 0.0
  %v1851 = vmax.f32 %v1746, 0.0
  %v1852 = vmax.f32 %v1751, 0.0
  %v1853 = vmax.f32 %v1754, 0.0
  %v1854 = vmax.f32 %v1759, 0.0
  %v1855 = vmax.f32 %v1762, 0.0
  %v1856 = vmax.f32 %v1767, 0.0
  %v1857 = vmax.f32 %v1770, 0.0
  %v1858 = vmax.f32 %v1775, 0.0
  %v1859 = vmax.f32 %v1778, 0.0
  %v1860 = vmax.f32 %v1783, 0.0
  %v1861 = vmax.f32 %v1786, 0.0
  %v1862 = vmax.f32 %v1791, 0.0
  %v1863 = vmax.f32 %v1794, 0.0
  %v1864 = vmax.f32 %v1799, 0.0
  %v1865 = vmax.f32 %v1802, 0.0
  %v1866 = vmax.f32 %v1807, 0.0
  %v1867 = vmax.f32 %v1810, 0.0
  %v1868 = vmax.f32 %v1815, 0.0
  %v1869 = vpack.c.bf16 %v1821, %v1820
  %v1870 = vpack.c.bf16 %v1823, %v1822
  %v1871 = vpack.c.bf16 %v1825, %v1824
  %v1872 = vpack.c.bf16 %v1827, %v1826
  %v1873 = vpack.c.bf16 %v1829, %v1828
  %v1874 = vpack.c.bf16 %v1831, %v1830
  %v1875 = vpack.c.bf16 %v1833, %v1832
  %v1876 = vpack.c.bf16 %v1835, %v1834
  %v1877 = vpack.c.bf16 %v1837, %v1836
  %v1878 = vpack.c.bf16 %v1839, %v1838
  %v1879 = vpack.c.bf16 %v1841, %v1840
  %v1880 = vpack.c.bf16 %v1843, %v1842
  %v1881 = vpack.c.bf16 %v1845, %v1844
  %v1882 = vpack.c.bf16 %v1847, %v1846
  %v1883 = vpack.c.bf16 %v1849, %v1848
  %v1884 = vpack.c.bf16 %v1851, %v1850
  %v1885 = vpack.c.bf16 %v1853, %v1852
  %v1886 = vpack.c.bf16 %v1855, %v1854
  %v1887 = vpack.c.bf16 %v1857, %v1856
  %v1888 = vpack.c.bf16 %v1859, %v1858
  %v1889 = vpack.c.bf16 %v1861, %v1860
  %v1890 = vpack.c.bf16 %v1863, %v1862
  %v1891 = vpack.c.bf16 %v1865, %v1864
  %v1892 = vpack.c.bf16 %v1867, %v1866
  %v1893 = vpack.c.bf16 %v1868, %v1868
  %v1894 = vld [vmem:[%s5] sm:$0xf]
  %v1895 = vld [vmem:[%s5 + $0x4] sm:$0xf]
  %v1896 = vld [vmem:[%s5 + $0x8] sm:$0xf]
  %v1897 = vld [vmem:[%s5 + $0xc] sm:$0xf]
  %v1898 = vld [vmem:[%s5 + $0x10] sm:$0xf]
  %v1899 = vld [vmem:[%s5 + $0x14] sm:$0xf]
  %v1900 = vld [vmem:[%s5 + $0x18] sm:$0xf]
  %v1901 = vld [vmem:[%s5 + $0x1c] sm:$0xf]
  %v1902 = vld [vmem:[%s5 + $0x20] sm:$0xf]
  %v1903 = vld [vmem:[%s5 + $0x24] sm:$0xf]
  %v1904 = vld [vmem:[%s5 + $0x28] sm:$0xf]
  %v1905 = vld [vmem:[%s5 + $0x2c] sm:$0xf]
  %v1906 = vld [vmem:[%s5 + $0x30] sm:$0xf]
  %v1907 = vld [vmem:[%s5 + $0x34] sm:$0xf]
  %v1908 = vld [vmem:[%s5 + $0x38] sm:$0xf]
  %v1909 = vld [vmem:[%s5 + $0x3c] sm:$0xf]
  %v1910 = vld [vmem:[%s6] sm:$0x1]
  %v1912 = vlaneseq
  %v1913 = vshrl.u32 %v1912, 7
  %v1914 = vsub.s32 0, %v1913
  %v1915 = vrot.slane %v1910, %v1914
  %v1933 = vunpack.c.l.b16 %v1894
  %v1934 = vunpack.c.l.b16 %v1895
  %v1935 = vunpack.c.l.b16 %v1896
  %v1936 = vunpack.c.l.b16 %v1897
  %v1937 = vunpack.c.l.b16 %v1898
  %v1938 = vunpack.c.l.b16 %v1899
  %v1939 = vunpack.c.l.b16 %v1900
  %v1940 = vunpack.c.l.b16 %v1901
  %v1941 = vunpack.c.l.b16 %v1902
  %v1942 = vunpack.c.l.b16 %v1903
  %v1943 = vunpack.c.l.b16 %v1904
  %v1944 = vunpack.c.l.b16 %v1905
  %v1945 = vunpack.c.l.b16 %v1906
  %v1946 = vunpack.c.l.b16 %v1907
  %v1947 = vunpack.c.l.b16 %v1908
  %v1948 = vunpack.c.l.b16 %v1909
  %v1949 = vpack.c.b16 %v1934, %v1933
  %v1950 = vpack.c.b16 %v1936, %v1935
  %v1951 = vpack.c.b16 %v1938, %v1937
  %v1952 = vpack.c.b16 %v1940, %v1939
  %v1953 = vpack.c.b16 %v1942, %v1941
  %v1954 = vpack.c.b16 %v1944, %v1943
  %v1955 = vpack.c.b16 %v1946, %v1945
  %v1956 = vpack.c.b16 %v1948, %v1947
  %1965 = vmatprep.subr.bf16.mxu0 0
  %1966 = vmatpush1.bf16.msra.mxu0 %v1949
  %1967 = vmatprep.subr.bf16.mxu0 0
  %1968 = vmatpush1.bf16.msra.mxu0 %v1950
  %1969 = vmatprep.subr.bf16.mxu0 0
  %1970 = vmatpush1.bf16.msra.mxu0 %v1951
  %1971 = vmatprep.subr.bf16.mxu0 0
  %1972 = vmatpush1.bf16.msra.mxu0 %v1952
  %1973 = vmatprep.subr.bf16.mxu0 0
  %1974 = vmatpush1.bf16.msra.mxu0 %v1953
  %1975 = vmatprep.subr.bf16.mxu0 0
  %1976 = vmatpush1.bf16.msra.mxu0 %v1954
  %1977 = vmatprep.subr.bf16.mxu0 0
  %1978 = vmatpush1.bf16.msra.mxu0 %v1955
  %1979 = vmatprep.subr.bf16.mxu0 0
  %1980 = vmatpush1.bf16.msra.mxu0 %v1956
  %1981 = vmatprep.subr.bf16.mxu0 0
  %1982 = vmatpush1.bf16.msra.mxu0 0
  %1983 = vmatprep.subr.bf16.mxu0 0
  %1984 = vmatpush1.bf16.msra.mxu0 0
  %1985 = vmatprep.subr.bf16.mxu0 0
  %1986 = vmatpush1.bf16.msra.mxu0 0
  %1987 = vmatprep.subr.bf16.mxu0 0
  %1988 = vmatpush1.bf16.msra.mxu0 0
  %1989 = vmatprep.subr.bf16.mxu0 0
  %1990 = vmatpush1.bf16.msra.mxu0 0
  %1991 = vmatprep.subr.bf16.mxu0 0
  %1992 = vmatpush1.bf16.msra.mxu0 0
  %1993 = vmatprep.subr.bf16.mxu0 0
  %1994 = vmatpush1.bf16.msra.mxu0 0
  %1995 = vmatprep.subr.bf16.mxu0 0
  %1996 = vmatpush1.bf16.msra.mxu0 0
  %1997 = vmatprep.mubr.bf16.mxu0 0
  %1998 = vmatmul.mubr.bf16.gmra.mrb[0].mxu0 %v1869
  %v1999 = vpop.f32.mrb[0].mxu0
  %v2000 = vadd.f32 %v1915, %v1999
  %v2001 = vpop.f32.mrb[0].mxu0
  %v2002 = vpop.f32.mrb[0].mxu0
  %v2003 = vadd.f32 %v1915, %v2002
  %v2004 = vpop.f32.mrb[0].mxu0
  %2005 = vmatprep.mubr.bf16.mxu0 0
  %2006 = vmatmul.mubr.bf16.gmra.mrb[0].mxu0 %v1870
  %v2007 = vpop.f32.mrb[0].mxu0
  %v2008 = vadd.f32 %v1915, %v2007
  %v2009 = vpop.f32.mrb[0].mxu0
  %v2010 = vpop.f32.mrb[0].mxu0
  %v2011 = vadd.f32 %v1915, %v2010
  %v2012 = vpop.f32.mrb[0].mxu0
  %2013 = vmatprep.mubr.bf16.mxu0 0
  %2014 = vmatmul.mubr.bf16.gmra.mrb[0].mxu0 %v1871
  %v2015 = vpop.f32.mrb[0].mxu0
  %v2016 = vadd.f32 %v1915, %v2015
  %v2017 = vpop.f32.mrb[0].mxu0
  %v2018 = vpop.f32.mrb[0].mxu0
  %v2019 = vadd.f32 %v1915, %v2018
  %v2020 = vpop.f32.mrb[0].mxu0
  %2021 = vmatprep.mubr.bf16.mxu0 0
  %2022 = vmatmul.mubr.bf16.gmra.mrb[0].mxu0 %v1872
  %v2023 = vpop.f32.mrb[0].mxu0
  %v2024 = vadd.f32 %v1915, %v2023
  %v2025 = vpop.f32.mrb[0].mxu0
  %v2026 = vpop.f32.mrb[0].mxu0
  %v2027 = vadd.f32 %v1915, %v2026
  %v2028 = vpop.f32.mrb[0].mxu0
  %2029 = vmatprep.mubr.bf16.mxu0 0
  %2030 = vmatmul.mubr.bf16.gmra.mrb[0].mxu0 %v1873
  %v2031 = vpop.f32.mrb[0].mxu0
  %v2032 = vadd.f32 %v1915, %v2031
  %v2033 = vpop.f32.mrb[0].mxu0
  %v2034 = vpop.f32.mrb[0].mxu0
  %v2035 = vadd.f32 %v1915, %v2034
  %v2036 = vpop.f32.mrb[0].mxu0
  %2037 = vmatprep.mubr.bf16.mxu0 0
  %2038 = vmatmul.mubr.bf16.gmra.mrb[0].mxu0 %v1874
  %v2039 = vpop.f32.mrb[0].mxu0
  %v2040 = vadd.f32 %v1915, %v2039
  %v2041 = vpop.f32.mrb[0].mxu0
  %v2042 = vpop.f32.mrb[0].mxu0
  %v2043 = vadd.f32 %v1915, %v2042
  %v2044 = vpop.f32.mrb[0].mxu0
  %2045 = vmatprep.mubr.bf16.mxu0 0
  %2046 = vmatmul.mubr.bf16.gmra.mrb[0].mxu0 %v1875
  %v2047 = vpop.f32.mrb[0].mxu0
  %v2048 = vadd.f32 %v1915, %v2047
  %v2049 = vpop.f32.mrb[0].mxu0
  %v2050 = vpop.f32.mrb[0].mxu0
  %v2051 = vadd.f32 %v1915, %v2050
  %v2052 = vpop.f32.mrb[0].mxu0
  %2053 = vmatprep.mubr.bf16.mxu0 0
  %2054 = vmatmul.mubr.bf16.gmra.mrb[0].mxu0 %v1876
  %v2055 = vpop.f32.mrb[0].mxu0
  %v2056 = vadd.f32 %v1915, %v2055
  %v2057 = vpop.f32.mrb[0].mxu0
  %v2058 = vpop.f32.mrb[0].mxu0
  %v2059 = vadd.f32 %v1915, %v2058
  %v2060 = vpop.f32.mrb[0].mxu0
  %2061 = vmatprep.mubr.bf16.mxu0 0
  %2062 = vmatmul.mubr.bf16.gmra.mrb[0].mxu0 %v1877
  %v2063 = vpop.f32.mrb[0].mxu0
  %v2064 = vadd.f32 %v1915, %v2063
  %v2065 = vpop.f32.mrb[0].mxu0
  %v2066 = vpop.f32.mrb[0].mxu0
  %v2067 = vadd.f32 %v1915, %v2066
  %v2068 = vpop.f32.mrb[0].mxu0
  %2069 = vmatprep.mubr.bf16.mxu0 0
  %2070 = vmatmul.mubr.bf16.gmra.mrb[0].mxu0 %v1878
  %v2071 = vpop.f32.mrb[0].mxu0
  %v2072 = vadd.f32 %v1915, %v2071
  %v2073 = vpop.f32.mrb[0].mxu0
  %v2074 = vpop.f32.mrb[0].mxu0
  %v2075 = vadd.f32 %v1915, %v2074
  %v2076 = vpop.f32.mrb[0].mxu0
  %2077 = vmatprep.mubr.bf16.mxu0 0
  %2078 = vmatmul.mubr.bf16.gmra.mrb[0].mxu0 %v1879
  %v2079 = vpop.f32.mrb[0].mxu0
  %v2080 = vadd.f32 %v1915, %v2079
  %v2081 = vpop.f32.mrb[0].mxu0
  %v2082 = vpop.f32.mrb[0].mxu0
  %v2083 = vadd.f32 %v1915, %v2082
  %v2084 = vpop.f32.mrb[0].mxu0
  %2085 = vmatprep.mubr.bf16.mxu0 0
  %2086 = vmatmul.mubr.bf16.gmra.mrb[0].mxu0 %v1880
  %v2087 = vpop.f32.mrb[0].mxu0
  %v2088 = vadd.f32 %v1915, %v2087
  %v2089 = vpop.f32.mrb[0].mxu0
  %v2090 = vpop.f32.mrb[0].mxu0
  %v2091 = vadd.f32 %v1915, %v2090
  %v2092 = vpop.f32.mrb[0].mxu0
  %2093 = vmatprep.mubr.bf16.mxu0 0
  %2094 = vmatmul.mubr.bf16.gmra.mrb[0].mxu0 %v1881
  %v2095 = vpop.f32.mrb[0].mxu0
  %v2096 = vadd.f32 %v1915, %v2095
  %v2097 = vpop.f32.mrb[0].mxu0
  %v2098 = vpop.f32.mrb[0].mxu0
  %v2099 = vadd.f32 %v1915, %v2098
  %v2100 = vpop.f32.mrb[0].mxu0
  %2101 = vmatprep.mubr.bf16.mxu0 0
  %2102 = vmatmul.mubr.bf16.gmra.mrb[0].mxu0 %v1882
  %v2103 = vpop.f32.mrb[0].mxu0
  %v2104 = vadd.f32 %v1915, %v2103
  %v2105 = vpop.f32.mrb[0].mxu0
  %v2106 = vpop.f32.mrb[0].mxu0
  %v2107 = vadd.f32 %v1915, %v2106
  %v2108 = vpop.f32.mrb[0].mxu0
  %2109 = vmatprep.mubr.bf16.mxu0 0
  %2110 = vmatmul.mubr.bf16.gmra.mrb[0].mxu0 %v1883
  %v2111 = vpop.f32.mrb[0].mxu0
  %v2112 = vadd.f32 %v1915, %v2111
  %v2113 = vpop.f32.mrb[0].mxu0
  %v2114 = vpop.f32.mrb[0].mxu0
  %v2115 = vadd.f32 %v1915, %v2114
  %v2116 = vpop.f32.mrb[0].mxu0
  %2117 = vmatprep.mubr.bf16.mxu0 0
  %2118 = vmatmul.mubr.bf16.gmra.mrb[0].mxu0 %v1884
  %v2119 = vpop.f32.mrb[0].mxu0
  %v2120 = vadd.f32 %v1915, %v2119
  %v2121 = vpop.f32.mrb[0].mxu0
  %v2122 = vpop.f32.mrb[0].mxu0
  %v2123 = vadd.f32 %v1915, %v2122
  %v2124 = vpop.f32.mrb[0].mxu0
  %2125 = vmatprep.mubr.bf16.mxu0 0
  %2126 = vmatmul.mubr.bf16.gmra.mrb[0].mxu0 %v1885
  %v2127 = vpop.f32.mrb[0].mxu0
  %v2128 = vadd.f32 %v1915, %v2127
  %v2129 = vpop.f32.mrb[0].mxu0
  %v2130 = vpop.f32.mrb[0].mxu0
  %v2131 = vadd.f32 %v1915, %v2130
  %v2132 = vpop.f32.mrb[0].mxu0
  %2133 = vmatprep.mubr.bf16.mxu0 0
  %2134 = vmatmul.mubr.bf16.gmra.mrb[0].mxu0 %v1886
  %v2135 = vpop.f32.mrb[0].mxu0
  %v2136 = vadd.f32 %v1915, %v2135
  %v2137 = vpop.f32.mrb[0].mxu0
  %v2138 = vpop.f32.mrb[0].mxu0
  %v2139 = vadd.f32 %v1915, %v2138
  %v2140 = vpop.f32.mrb[0].mxu0
  %2141 = vmatprep.mubr.bf16.mxu0 0
  %2142 = vmatmul.mubr.bf16.gmra.mrb[0].mxu0 %v1887
  %v2143 = vpop.f32.mrb[0].mxu0
  %v2144 = vadd.f32 %v1915, %v2143
  %v2145 = vpop.f32.mrb[0].mxu0
  %v2146 = vpop.f32.mrb[0].mxu0
  %v2147 = vadd.f32 %v1915, %v2146
  %v2148 = vpop.f32.mrb[0].mxu0
  %2149 = vmatprep.mubr.bf16.mxu0 0
  %2150 = vmatmul.mubr.bf16.gmra.mrb[0].mxu0 %v1888
  %v2151 = vpop.f32.mrb[0].mxu0
  %v2152 = vadd.f32 %v1915, %v2151
  %v2153 = vpop.f32.mrb[0].mxu0
  %v2154 = vpop.f32.mrb[0].mxu0
  %v2155 = vadd.f32 %v1915, %v2154
  %v2156 = vpop.f32.mrb[0].mxu0
  %2157 = vmatprep.mubr.bf16.mxu0 0
  %2158 = vmatmul.mubr.bf16.gmra.mrb[0].mxu0 %v1889
  %v2159 = vpop.f32.mrb[0].mxu0
  %v2160 = vadd.f32 %v1915, %v2159
  %v2161 = vpop.f32.mrb[0].mxu0
  %v2162 = vpop.f32.mrb[0].mxu0
  %v2163 = vadd.f32 %v1915, %v2162
  %v2164 = vpop.f32.mrb[0].mxu0
  %2165 = vmatprep.mubr.bf16.mxu0 0
  %2166 = vmatmul.mubr.bf16.gmra.mrb[0].mxu0 %v1890
  %v2167 = vpop.f32.mrb[0].mxu0
  %v2168 = vadd.f32 %v1915, %v2167
  %v2169 = vpop.f32.mrb[0].mxu0
  %v2170 = vpop.f32.mrb[0].mxu0
  %v2171 = vadd.f32 %v1915, %v2170
  %v2172 = vpop.f32.mrb[0].mxu0
  %2173 = vmatprep.mubr.bf16.mxu0 0
  %2174 = vmatmul.mubr.bf16.gmra.mrb[0].mxu0 %v1891
  %v2175 = vpop.f32.mrb[0].mxu0
  %v2176 = vadd.f32 %v1915, %v2175
  %v2177 = vpop.f32.mrb[0].mxu0
  %v2178 = vpop.f32.mrb[0].mxu0
  %v2179 = vadd.f32 %v1915, %v2178
  %v2180 = vpop.f32.mrb[0].mxu0
  %2181 = vmatprep.mubr.bf16.mxu0 0
  %2182 = vmatmul.mubr.bf16.gmra.mrb[0].mxu0 %v1892
  %v2183 = vpop.f32.mrb[0].mxu0
  %v2184 = vadd.f32 %v1915, %v2183
  %v2185 = vpop.f32.mrb[0].mxu0
  %v2186 = vpop.f32.mrb[0].mxu0
  %v2187 = vadd.f32 %v1915, %v2186
  %v2188 = vpop.f32.mrb[0].mxu0
  %2189 = vmatprep.mubr.bf16.mxu0 0
  %2190 = vmatmul.mubr.bf16.gmra.mrb[0].mxu0 %v1893
  %v2191 = vpop.f32.mrb[0].mxu0
  %v2192 = vadd.f32 %v1915, %v2191
  %v2193 = vpop.f32.mrb[0].mxu0
  %v2194 = vpop.f32.mrb[0].mxu0
  %v2195 = vpop.f32.mrb[0].mxu0
  %2196 = vdwg.mxu0
  %2197 = vst [vmem:[%s7] sm:$0xff] %v2000
  %2198 = vst [vmem:[%s7 + $0x8] sm:$0xff] %v2003
  %2199 = vst [vmem:[%s7 + $0x10] sm:$0xff] %v2008
  %2200 = vst [vmem:[%s7 + $0x18] sm:$0xff] %v2011
  %2201 = vst [vmem:[%s7 + $0x20] sm:$0xff] %v2016
  %2202 = vst [vmem:[%s7 + $0x28] sm:$0xff] %v2019
  %2203 = vst [vmem:[%s7 + $0x30] sm:$0xff] %v2024
  %2204 = vst [vmem:[%s7 + $0x38] sm:$0xff] %v2027
  %2205 = vst [vmem:[%s7 + $0x40] sm:$0xff] %v2032
  %2206 = vst [vmem:[%s7 + $0x48] sm:$0xff] %v2035
  %2207 = vst [vmem:[%s7 + $0x50] sm:$0xff] %v2040
  %2208 = vst [vmem:[%s7 + $0x58] sm:$0xff] %v2043
  %2209 = vst [vmem:[%s7 + $0x60] sm:$0xff] %v2048
  %2210 = vst [vmem:[%s7 + $0x68] sm:$0xff] %v2051
  %2211 = vst [vmem:[%s7 + $0x70] sm:$0xff] %v2056
  %2212 = vst [vmem:[%s7 + $0x78] sm:$0xff] %v2059
  %2213 = vst [vmem:[%s7 + $0x80] sm:$0xff] %v2064
  %2214 = vst [vmem:[%s7 + $0x88] sm:$0xff] %v2067
  %2215 = vst [vmem:[%s7 + $0x90] sm:$0xff] %v2072
  %2216 = vst [vmem:[%s7 + $0x98] sm:$0xff] %v2075
  %2217 = vst [vmem:[%s7 + $0xa0] sm:$0xff] %v2080
  %2218 = vst [vmem:[%s7 + $0xa8] sm:$0xff] %v2083
  %2219 = vst [vmem:[%s7 + $0xb0] sm:$0xff] %v2088
  %2220 = vst [vmem:[%s7 + $0xb8] sm:$0xff] %v2091
  %2221 = vst [vmem:[%s7 + $0xc0] sm:$0xff] %v2096
  %2222 = vst [vmem:[%s7 + $0xc8] sm:$0xff] %v2099
  %2223 = vst [vmem:[%s7 + $0xd0] sm:$0xff] %v2104
  %2224 = vst [vmem:[%s7 + $0xd8] sm:$0xff] %v2107
  %2225 = vst [vmem:[%s7 + $0xe0] sm:$0xff] %v2112
  %2226 = vst [vmem:[%s7 + $0xe8] sm:$0xff] %v2115
  %2227 = vst [vmem:[%s7 + $0xf0] sm:$0xff] %v2120
  %2228 = vst [vmem:[%s7 + $0xf8] sm:$0xff] %v2123
  %2229 = vst [vmem:[%s7 + $0x100] sm:$0xff] %v2128
  %2230 = vst [vmem:[%s7 + $0x108] sm:$0xff] %v2131
  %2231 = vst [vmem:[%s7 + $0x110] sm:$0xff] %v2136
  %2232 = vst [vmem:[%s7 + $0x118] sm:$0xff] %v2139
  %2233 = vst [vmem:[%s7 + $0x120] sm:$0xff] %v2144
  %2234 = vst [vmem:[%s7 + $0x128] sm:$0xff] %v2147
  %2235 = vst [vmem:[%s7 + $0x130] sm:$0xff] %v2152
  %2236 = vst [vmem:[%s7 + $0x138] sm:$0xff] %v2155
  %2237 = vst [vmem:[%s7 + $0x140] sm:$0xff] %v2160
  %2238 = vst [vmem:[%s7 + $0x148] sm:$0xff] %v2163
  %2239 = vst [vmem:[%s7 + $0x150] sm:$0xff] %v2168
  %2240 = vst [vmem:[%s7 + $0x158] sm:$0xff] %v2171
  %2241 = vst [vmem:[%s7 + $0x160] sm:$0xff] %v2176
  %2242 = vst [vmem:[%s7 + $0x168] sm:$0xff] %v2179
  %2243 = vst [vmem:[%s7 + $0x170] sm:$0xff] %v2184
  %2244 = vst [vmem:[%s7 + $0x178] sm:$0xff] %v2187
  %2245 = vst [vmem:[%s7 + $0x180] sm:$0xff] %v2192
  // Predicated region
  $region30: #{priors_downproj_path.1} parent=0 // pred_check
    _
  $region31: #{priors_downproj_path.1} parent=0 // pred_check_branch
    %2247 = sbr.rel (0) target = $region33
  $region32: #{priors_downproj_path.1} parent=0 // pred_region
    _
  $region33: #{priors_downproj_path.1} parent=0 // pred_fallthru
    _
  // Predicated region
  $region34: #{priors_downproj_path.1} parent=0 // pred_check
    _
  $region35: #{priors_downproj_path.1} parent=0 // pred_check_branch
    %2249 = sbr.rel (0) target = $region37
  $region36: #{priors_downproj_path.1} parent=0 // pred_region
    _
  $region37: #{priors_downproj_path.1} parent=0 // pred_fallthru
    _

</llo_original>
